<compile_context>
chip_gen: v7x
topology: tpu7x:2x2x1
jax: 0.10.0
libtpu: 0.0.40
codegen_flags: <defaults>
</compile_context>

<pallas_src>
import functools

import jax
import jax.numpy as jnp
from jax import lax
from jax.experimental import pallas as pl
from jax.experimental.pallas import tpu as pltpu


def _round_up(x, m):
    return ((x + m - 1) // m) * m


# ----------------------------------------------------------------------------
# Pallas kernel: one invocation runs the full T-step decode for one batch block.
# ----------------------------------------------------------------------------
def _decoder_kernel(tok_ref, latent_ref, slab_ref, out_ref, gi_scr, hs_scr,
                    *, T, B, L, H, A, GH,
                    o_wlat, o_blat, o_tab, o_whh, o_lbias, o_wd, o_bd):
    A_pad = out_ref.shape[-1]

    # ---- initial hidden state: ReLU(latent @ W_L + b_L) --------------------
    # TODO(synk): nn.Dropout(0.1) omitted (inference-mode identity).
    w_lat = slab_ref[o_wlat:o_wlat + L, 0:H]
    b_lat = slab_ref[o_blat:o_blat + 1, 0:H]
    h0 = jnp.maximum(
        jnp.dot(latent_ref[...], w_lat, preferred_element_type=jnp.float32) + b_lat,
        0.0)                                                    # (B, H)

    # ---- fused embedding + input projection (+ b_ih, + b_hh[r,z]) ----------
    # One lane-dense one-hot matmul against the precomputed (A, 3H) table.
    tok = tok_ref[0]                                            # (T*B, 1) int32, time-major
    onehot = (tok == lax.broadcasted_iota(jnp.int32, (T * B, A), 1)
              ).astype(jnp.float32)                             # (T*B, A)
    table = slab_ref[o_tab:o_tab + A, 0:GH]                     # (A, GH)
    gi = jnp.dot(onehot, table, preferred_element_type=jnp.float32)   # (T*B, GH)
    gi_scr[...] = gi.reshape(T, B, GH)

    # Loop-invariant packed recurrent weights; lbias carries b_hn on the n lanes.
    w_hh = slab_ref[o_whh:o_whh + H, 0:GH]                      # (H, GH)
    lbias = slab_ref[o_lbias:o_lbias + 1, 0:GH]                 # (1, GH)

    def step(t, h):
        gi_t = gi_scr[t]                                        # (B, GH), sublane-aligned
        # Single packed recurrent matmul per step (r|z|n gates in one pass).
        gh = jnp.dot(h, w_hh, preferred_element_type=jnp.float32) + lbias   # (B, GH)
        # One sigmoid over the packed vreg: r, z lanes valid; n lanes unused.
        s = jax.nn.sigmoid(gi_t + gh)
        r = s[:, 0:H]
        z = s[:, H:2 * H]
        n = jnp.tanh(gi_t[:, 2 * H:3 * H] + r * gh[:, 2 * H:3 * H])
        h_new = n + z * (h - n)                                 # == (1-z)*n + z*h
        hs_scr[t] = h_new                                       # aligned (8, H) store
        return h_new

    _ = lax.fori_loop(0, T, step, h0, unroll=True)

    # ---- hoisted output projection: one (T*B,H)@(H,A_pad) matmul,
    #      single lane-dense (128-wide) store --------------------------------
    w_d = slab_ref[o_wd:o_wd + H, 0:A_pad]
    b_d = slab_ref[o_bd:o_bd + 1, 0:A_pad]
    hs = hs_scr[...].reshape(T * B, H)
    out = jnp.dot(hs, w_d, preferred_element_type=jnp.float32) + b_d
    out_ref[...] = out.reshape(T, B, A_pad).astype(out_ref.dtype)


# ----------------------------------------------------------------------------
# Wrapper: token shift (teacher forcing), weight packing, single pallas_call.
# ----------------------------------------------------------------------------
@jax.jit
def decoder_forward(latent, target, params):
    """Teacher-forced Decoder forward. latent: (B, L) f32, target: (B, T) int32
    -> logits: (B, T, A) f32 (batch_first)."""
    emb = params["embedding"]                                 # (A, E)
    w_lat, b_lat = params["w_latent"], params["b_latent"]     # (L, H), (1, H)
    w_ih, b_ih = params["w_ih"], params["b_ih"]               # (3, E, H), (3, 1, H)
    w_hh, b_hh = params["w_hh"], params["b_hh"]               # (3, H, H), (3, 1, H)
    w_d, b_d = params["w_dense"], params["b_dense"]           # (H, A), (1, A)

    B, L = latent.shape
    T = target.shape[1]
    A, _E = emb.shape
    H = w_hh.shape[-1]

    B_BLK = 8                                  # one sublane tile per batch block
    nb = pl.cdiv(B, B_BLK)                     # grid size ("parallel" -> v7x 2nd core)
    Bp = nb * B_BLK
    GH = _round_up(3 * H, 128)                 # packed gate lane width
    A_pad = _round_up(A, 128)                  # lane-dense logits width
    W = max(GH, A_pad)                         # slab lane width

    # Teacher forcing: step 0 consumes token 0, step i consumes target[:, i-1].
    tokens = jnp.concatenate(
        [jnp.zeros((B, 1), jnp.int32), target[:, :-1].astype(jnp.int32)], axis=1)  # (B, T)
    tokens = jnp.pad(tokens, ((0, Bp - B), (0, 0)))            # pad batch rows (token 0)
    # Per-block time-major layout: (nb, T*B_BLK, 1).
    tok_blk = tokens.reshape(nb, B_BLK, T).transpose(0, 2, 1).reshape(nb, T * B_BLK, 1)
    latent_p = jnp.pad(latent, ((0, Bp - B), (0, 0)))          # zero-padded rows stay finite

    # ---- one packed weight slab (single input DMA), 8-row-aligned sections ----
    def lane_pad(x):
        return jnp.pad(x, ((0, 0), (0, W - x.shape[1])))

    def row_pad(x, r):
        return jnp.pad(x, ((0, r - x.shape[0]), (0, 0)))

    up8 = lambda n: _round_up(n, 8)

    w_ih_cat = jnp.concatenate([w_ih[0], w_ih[1], w_ih[2]], axis=1)           # (E, 3H)
    b_gi = jnp.concatenate([b_ih[0] + b_hh[0], b_ih[1] + b_hh[1], b_ih[2]], axis=1)
    table = emb @ w_ih_cat + b_gi                                             # (A, 3H)
    w_hh_cat = jnp.concatenate([w_hh[0], w_hh[1], w_hh[2]], axis=1)           # (H, 3H)
    lbias = jnp.pad(b_hh[2], ((0, 0), (2 * H, 0)))                            # b_hn on n lanes

    o_wlat = 0
    o_blat = o_wlat + up8(L)
    o_tab = o_blat + 8
    o_whh = o_tab + up8(A)
    o_lbias = o_whh + up8(H)
    o_wd = o_lbias + 8
    o_bd = o_wd + up8(H)
    R = o_bd + 8

    slab = jnp.concatenate([
        row_pad(lane_pad(w_lat), up8(L)),
        row_pad(lane_pad(b_lat), 8),
        row_pad(lane_pad(table), up8(A)),
        row_pad(lane_pad(w_hh_cat), up8(H)),
        row_pad(lane_pad(lbias), 8),
        row_pad(lane_pad(w_d), up8(H)),
        row_pad(lane_pad(b_d), 8),
    ], axis=0)                                                  # (R, W) f32

    kernel = functools.partial(
        _decoder_kernel, T=T, B=B_BLK, L=L, H=H, A=A, GH=GH,
        o_wlat=o_wlat, o_blat=o_blat, o_tab=o_tab, o_whh=o_whh,
        o_lbias=o_lbias, o_wd=o_wd, o_bd=o_bd)

    grid_spec = pltpu.PrefetchScalarGridSpec(
        num_scalar_prefetch=0,
        grid=(nb,),                                            # batch blocks, "parallel"
        in_specs=[
            pl.BlockSpec((1, T * B_BLK, 1), lambda i: (i, 0, 0)),   # tokens (time-major)
            pl.BlockSpec((B_BLK, L), lambda i: (i, 0)),             # latent batch slice
            pl.BlockSpec((R, W), lambda i: (0, 0)),                 # packed weight slab
        ],
        out_specs=pl.BlockSpec((T, B_BLK, A_pad), lambda i: (0, i, 0)),
        scratch_shapes=[
            pltpu.VMEM((T, B_BLK, GH), jnp.float32),   # hoisted packed input projections
            pltpu.VMEM((T, B_BLK, H), jnp.float32),    # per-step hidden states
        ],
    )

    logits = pl.pallas_call(
        kernel,
        grid_spec=grid_spec,
        out_shape=jax.ShapeDtypeStruct((T, Bp, A_pad), jnp.float32),
        compiler_params=pltpu.CompilerParams(dimension_semantics=("parallel",)),
    )(tok_blk, latent_p, slab)

    # Un-pad batch rows and logits lanes, return batch_first (B, T, A).
    return jnp.transpose(logits[:, :B, :A], (1, 0, 2))


# ----------------------------------------------------------------------------
# Pure-JAX reference (mirrors the PyTorch Decoder forward with target given).
# ----------------------------------------------------------------------------
def decoder_forward_ref(latent, target, params):
    emb = params["embedding"]
    w_lat, b_lat = params["w_latent"], params["b_latent"]
    w_ih, b_ih = params["w_ih"], params["b_ih"]
    w_hh, b_hh = params["w_hh"], params["b_hh"]
    w_d, b_d = params["w_dense"], params["b_dense"]

    B = latent.shape[0]
    T = target.shape[1]
    h = jnp.maximum(latent @ w_lat + b_lat, 0.0)
    tokens = jnp.concatenate(
        [jnp.zeros((B, 1), jnp.int32), target[:, :-1].astype(jnp.int32)], axis=1)
    outs = []
    for t in range(T):
        x = emb[tokens[:, t]]
        r = jax.nn.sigmoid(x @ w_ih[0] + b_ih[0] + h @ w_hh[0] + b_hh[0])
        z = jax.nn.sigmoid(x @ w_ih[1] + b_ih[1] + h @ w_hh[1] + b_hh[1])
        n = jnp.tanh(x @ w_ih[2] + b_ih[2] + r * (h @ w_hh[2] + b_hh[2]))
        h = (1.0 - z) * n + z * h
        outs.append(h @ w_d + b_d)
    return jnp.stack(outs, axis=1)   # (B, T, A)


# ----------------------------------------------------------------------------
# Deterministic synthetic parameters (PyTorch-style uniform init).
# ----------------------------------------------------------------------------
def make_params(key, L, hidden_size, alphabet_len, embedding_dim):
    H, A, E = hidden_size, alphabet_len, embedding_dim
    keys = jax.random.split(key, 9)
    k_rnn = 1.0 / jnp.sqrt(jnp.float32(H))
    k_lat = 1.0 / jnp.sqrt(jnp.float32(L))
    u = lambda kk, shape, s: jax.random.uniform(kk, shape, jnp.float32, -s, s)
    return {
        "embedding": jax.random.normal(keys[0], (A, E), jnp.float32),
        "w_latent": u(keys[1], (L, H), k_lat),
        "b_latent": u(keys[2], (1, H), k_lat),
        "w_ih": u(keys[3], (3, E, H), k_rnn),
        "b_ih": u(keys[4], (3, 1, H), k_rnn),
        "w_hh": u(keys[5], (3, H, H), k_rnn),
        "b_hh": u(keys[6], (3, 1, H), k_rnn),
        "w_dense": u(keys[7], (H, A), k_rnn),
        "b_dense": u(keys[8], (1, A), k_rnn),
    }


if __name__ == "__main__":
    # Small shapes consistent with the module: batch=2, latent L=16, seq=8,
    # hidden=32, alphabet=32, embedding_dim=8.
    B, L, T, H, A, E = 2, 16, 8, 32, 32, 8

    key = jax.random.PRNGKey(0)
    k_lat, k_tgt, k_par = jax.random.split(key, 3)

    params = make_params(k_par, L=L, hidden_size=H, alphabet_len=A, embedding_dim=E)
    latent = jax.random.normal(k_lat, (B, L), jnp.float32)
    target = jax.random.randint(k_tgt, (B, T), 0, A, dtype=jnp.int32)

    prediction = decoder_forward(latent, target, params)
    jax.block_until_ready(prediction)

    ref = decoder_forward_ref(latent, target, params)
    assert prediction.shape == (B, T, A)
    assert jnp.allclose(prediction, ref, rtol=1e-4, atol=1e-4), (
        "max abs err = %g" % float(jnp.max(jnp.abs(prediction - ref))))

    print("KERNEL_OK")
</pallas_src>

<mosaic_0001>
module attributes {stable_mosaic.version = 11 : i64} {
  func.func @_decoder_kernel(%arg0: i32, %arg1: memref<1x64x1xi32, #tpu.memory_space<vmem>>, %arg2: memref<8x16xf32, #tpu.memory_space<vmem>>, %arg3: memref<136x128xf32, #tpu.memory_space<vmem>>, %arg4: memref<8x8x128xf32, #tpu.memory_space<vmem>>, %arg5: memref<8x8x128xf32, #tpu.memory_space<vmem>>, %arg6: memref<8x8x32xf32, #tpu.memory_space<vmem>>) attributes {dimension_semantics = [#tpu.dimension_semantics<parallel>], iteration_bounds = array<i64: 1>, scalar_prefetch = 0 : i64, scratch_operands = 2 : i64, tpu.core_type = #tpu.core_type<tc>, window_params = [{transform_indices = @transform_0, window_bounds = array<i64: 1, 64, 1>}, {transform_indices = @transform_1, window_bounds = array<i64: 8, 16>}, {pipeline_mode = #tpu.pipeline_mode<synchronous>, transform_indices = @transform_2, window_bounds = array<i64: 136, 128>}, {transform_indices = @transform_3, window_bounds = array<i64: 8, 8, 128>}]} {
    %c0 = arith.constant 0 : index
    %c0_0 = arith.constant 0 : index
    %0 = vector.load %arg3[%c0, %c0_0] : memref<136x128xf32, #tpu.memory_space<vmem>>, vector<16x32xf32>
    %c16 = arith.constant 16 : index
    %c0_1 = arith.constant 0 : index
    %1 = vector.load %arg3[%c16, %c0_1] : memref<136x128xf32, #tpu.memory_space<vmem>>, vector<1x32xf32>
    %c0_2 = arith.constant 0 : index
    %c0_3 = arith.constant 0 : index
    %2 = vector.load %arg2[%c0_2, %c0_3] : memref<8x16xf32, #tpu.memory_space<vmem>>, vector<8x16xf32>
    %cst = arith.constant dense<0.000000e+00> : vector<8x32xf32>
    %3 = tpu.matmul %2, %0, %cst {dimension_numbers = #tpu.dot_dimension_numbers<[1], [0], [0], [1], [0, 0, 1, 1], [], []>} : vector<8x16xf32>, vector<16x32xf32>, vector<8x32xf32> -> vector<8x32xf32>
    %4 = vector.broadcast %1 : vector<1x32xf32> to vector<8x32xf32>
    %5 = arith.addf %3, %4 : vector<8x32xf32>
    %cst_4 = arith.constant 0.000000e+00 : f32
    %6 = vector.broadcast %cst_4 : f32 to vector<8x32xf32>
    %7 = arith.maximumf %5, %6 : vector<8x32xf32>
    %c0_5 = arith.constant 0 : index
    %c0_6 = arith.constant 0 : index
    %c0_7 = arith.constant 0 : index
    %8 = vector.load %arg1[%c0_5, %c0_6, %c0_7] : memref<1x64x1xi32, #tpu.memory_space<vmem>>, vector<1x64x1xi32>
    %9 = vector.shape_cast %8 : vector<1x64x1xi32> to vector<64x1xi32>
    %10 = tpu.iota {dimensions = array<i32: 1>} : vector<64x32xi32>
    %11 = vector.broadcast %9 : vector<64x1xi32> to vector<64x32xi32>
    %12 = arith.cmpi eq, %11, %10 : vector<64x32xi32>
    %13 = arith.extui %12 : vector<64x32xi1> to vector<64x32xi32>
    %14 = arith.sitofp %13 : vector<64x32xi32> to vector<64x32xf32>
    %c24 = arith.constant 24 : index
    %c0_8 = arith.constant 0 : index
    %15 = vector.load %arg3[%c24, %c0_8] : memref<136x128xf32, #tpu.memory_space<vmem>>, vector<32x128xf32>
    %cst_9 = arith.constant dense<0.000000e+00> : vector<64x128xf32>
    %16 = tpu.matmul %14, %15, %cst_9 {dimension_numbers = #tpu.dot_dimension_numbers<[1], [0], [0], [1], [0, 0, 1, 1], [], []>} : vector<64x32xf32>, vector<32x128xf32>, vector<64x128xf32> -> vector<64x128xf32>
    %17 = vector.shape_cast %16 : vector<64x128xf32> to vector<8x8x128xf32>
    %c0_10 = arith.constant 0 : index
    %c0_11 = arith.constant 0 : index
    %c0_12 = arith.constant 0 : index
    %18 = vector.load %arg5[%c0_10, %c0_11, %c0_12] : memref<8x8x128xf32, #tpu.memory_space<vmem>>, vector<8x8x128xf32>
    tpu.vector_store %arg5[%c0_10, %c0_11, %c0_12], %17 {strides = array<i32>} : memref<8x8x128xf32, #tpu.memory_space<vmem>>, vector<8x8x128xf32>,
    %c56 = arith.constant 56 : index
    %c0_13 = arith.constant 0 : index
    %19 = vector.load %arg3[%c56, %c0_13] : memref<136x128xf32, #tpu.memory_space<vmem>>, vector<32x128xf32>
    %c88 = arith.constant 88 : index
    %c0_14 = arith.constant 0 : index
    %20 = vector.load %arg3[%c88, %c0_14] : memref<136x128xf32, #tpu.memory_space<vmem>>, vector<1x128xf32>
    %c0_i32 = arith.constant 0 : i32
    %21 = arith.index_cast %c0_i32 : i32 to index
    %c0_15 = arith.constant 0 : index
    %c0_16 = arith.constant 0 : index
    %22 = vector.load %arg5[%21, %c0_15, %c0_16] : memref<8x8x128xf32, #tpu.memory_space<vmem>>, vector<1x8x128xf32>
    %23 = vector.shape_cast %22 : vector<1x8x128xf32> to vector<8x128xf32>
    %cst_17 = arith.constant dense<0.000000e+00> : vector<8x128xf32>
    %24 = tpu.matmul %7, %19, %cst_17 {dimension_numbers = #tpu.dot_dimension_numbers<[1], [0], [0], [1], [0, 0, 1, 1], [], []>} : vector<8x32xf32>, vector<32x128xf32>, vector<8x128xf32> -> vector<8x128xf32>
    %25 = vector.broadcast %20 : vector<1x128xf32> to vector<8x128xf32>
    %26 = arith.addf %24, %25 : vector<8x128xf32>
    %27 = arith.addf %23, %26 : vector<8x128xf32>
    %28 = arith.negf %27 : vector<8x128xf32>
    %29 = math.exp %28 : vector<8x128xf32>
    %cst_18 = arith.constant 1.000000e+00 : f32
    %30 = vector.broadcast %cst_18 : f32 to vector<8x128xf32>
    %31 = arith.addf %30, %29 : vector<8x128xf32>
    %32 = arith.divf %30, %31 : vector<8x128xf32>
    %33 = vector.extract_strided_slice %32 {offsets = [0, 0], sizes = [8, 32], strides = [1, 1]} : vector<8x128xf32> to vector<8x32xf32>
    %34 = vector.extract_strided_slice %32 {offsets = [0, 32], sizes = [8, 32], strides = [1, 1]} : vector<8x128xf32> to vector<8x32xf32>
    %35 = vector.extract_strided_slice %23 {offsets = [0, 64], sizes = [8, 32], strides = [1, 1]} : vector<8x128xf32> to vector<8x32xf32>
    %36 = vector.extract_strided_slice %26 {offsets = [0, 64], sizes = [8, 32], strides = [1, 1]} : vector<8x128xf32> to vector<8x32xf32>
    %37 = arith.mulf %33, %36 : vector<8x32xf32>
    %38 = arith.addf %35, %37 : vector<8x32xf32>
    %39 = math.tanh %38 : vector<8x32xf32>
    %40 = arith.subf %7, %39 : vector<8x32xf32>
    %41 = arith.mulf %34, %40 : vector<8x32xf32>
    %42 = arith.addf %39, %41 : vector<8x32xf32>
    %43 = arith.index_cast %c0_i32 : i32 to index
    %c0_19 = arith.constant 0 : index
    %c0_20 = arith.constant 0 : index
    %44 = vector.load %arg6[%43, %c0_19, %c0_20] : memref<8x8x32xf32, #tpu.memory_space<vmem>>, vector<1x8x32xf32>
    %45 = vector.shape_cast %44 : vector<1x8x32xf32> to vector<8x32xf32>
    %46 = vector.shape_cast %42 : vector<8x32xf32> to vector<1x8x32xf32>
    tpu.vector_store %arg6[%43, %c0_19, %c0_20], %46 {strides = array<i32>} : memref<8x8x32xf32, #tpu.memory_space<vmem>>, vector<1x8x32xf32>,
    %c1_i32 = arith.constant 1 : i32
    %47 = arith.index_cast %c1_i32 : i32 to index
    %c0_21 = arith.constant 0 : index
    %c0_22 = arith.constant 0 : index
    %48 = vector.load %arg5[%47, %c0_21, %c0_22] : memref<8x8x128xf32, #tpu.memory_space<vmem>>, vector<1x8x128xf32>
    %49 = vector.shape_cast %48 : vector<1x8x128xf32> to vector<8x128xf32>
    %cst_23 = arith.constant dense<0.000000e+00> : vector<8x128xf32>
    %50 = tpu.matmul %42, %19, %cst_23 {dimension_numbers = #tpu.dot_dimension_numbers<[1], [0], [0], [1], [0, 0, 1, 1], [], []>} : vector<8x32xf32>, vector<32x128xf32>, vector<8x128xf32> -> vector<8x128xf32>
    %51 = vector.broadcast %20 : vector<1x128xf32> to vector<8x128xf32>
    %52 = arith.addf %50, %51 : vector<8x128xf32>
    %53 = arith.addf %49, %52 : vector<8x128xf32>
    %54 = arith.negf %53 : vector<8x128xf32>
    %55 = math.exp %54 : vector<8x128xf32>
    %cst_24 = arith.constant 1.000000e+00 : f32
    %56 = vector.broadcast %cst_24 : f32 to vector<8x128xf32>
    %57 = arith.addf %56, %55 : vector<8x128xf32>
    %58 = arith.divf %56, %57 : vector<8x128xf32>
    %59 = vector.extract_strided_slice %58 {offsets = [0, 0], sizes = [8, 32], strides = [1, 1]} : vector<8x128xf32> to vector<8x32xf32>
    %60 = vector.extract_strided_slice %58 {offsets = [0, 32], sizes = [8, 32], strides = [1, 1]} : vector<8x128xf32> to vector<8x32xf32>
    %61 = vector.extract_strided_slice %49 {offsets = [0, 64], sizes = [8, 32], strides = [1, 1]} : vector<8x128xf32> to vector<8x32xf32>
    %62 = vector.extract_strided_slice %52 {offsets = [0, 64], sizes = [8, 32], strides = [1, 1]} : vector<8x128xf32> to vector<8x32xf32>
    %63 = arith.mulf %59, %62 : vector<8x32xf32>
    %64 = arith.addf %61, %63 : vector<8x32xf32>
    %65 = math.tanh %64 : vector<8x32xf32>
    %66 = arith.subf %42, %65 : vector<8x32xf32>
    %67 = arith.mulf %60, %66 : vector<8x32xf32>
    %68 = arith.addf %65, %67 : vector<8x32xf32>
    %69 = arith.index_cast %c1_i32 : i32 to index
    %c0_25 = arith.constant 0 : index
    %c0_26 = arith.constant 0 : index
    %70 = vector.load %arg6[%69, %c0_25, %c0_26] : memref<8x8x32xf32, #tpu.memory_space<vmem>>, vector<1x8x32xf32>
    %71 = vector.shape_cast %70 : vector<1x8x32xf32> to vector<8x32xf32>
    %72 = vector.shape_cast %68 : vector<8x32xf32> to vector<1x8x32xf32>
    tpu.vector_store %arg6[%69, %c0_25, %c0_26], %72 {strides = array<i32>} : memref<8x8x32xf32, #tpu.memory_space<vmem>>, vector<1x8x32xf32>,
    %c2_i32 = arith.constant 2 : i32
    %73 = arith.index_cast %c2_i32 : i32 to index
    %c0_27 = arith.constant 0 : index
    %c0_28 = arith.constant 0 : index
    %74 = vector.load %arg5[%73, %c0_27, %c0_28] : memref<8x8x128xf32, #tpu.memory_space<vmem>>, vector<1x8x128xf32>
    %75 = vector.shape_cast %74 : vector<1x8x128xf32> to vector<8x128xf32>
    %cst_29 = arith.constant dense<0.000000e+00> : vector<8x128xf32>
    %76 = tpu.matmul %68, %19, %cst_29 {dimension_numbers = #tpu.dot_dimension_numbers<[1], [0], [0], [1], [0, 0, 1, 1], [], []>} : vector<8x32xf32>, vector<32x128xf32>, vector<8x128xf32> -> vector<8x128xf32>
    %77 = vector.broadcast %20 : vector<1x128xf32> to vector<8x128xf32>
    %78 = arith.addf %76, %77 : vector<8x128xf32>
    %79 = arith.addf %75, %78 : vector<8x128xf32>
    %80 = arith.negf %79 : vector<8x128xf32>
    %81 = math.exp %80 : vector<8x128xf32>
    %cst_30 = arith.constant 1.000000e+00 : f32
    %82 = vector.broadcast %cst_30 : f32 to vector<8x128xf32>
    %83 = arith.addf %82, %81 : vector<8x128xf32>
    %84 = arith.divf %82, %83 : vector<8x128xf32>
    %85 = vector.extract_strided_slice %84 {offsets = [0, 0], sizes = [8, 32], strides = [1, 1]} : vector<8x128xf32> to vector<8x32xf32>
    %86 = vector.extract_strided_slice %84 {offsets = [0, 32], sizes = [8, 32], strides = [1, 1]} : vector<8x128xf32> to vector<8x32xf32>
    %87 = vector.extract_strided_slice %75 {offsets = [0, 64], sizes = [8, 32], strides = [1, 1]} : vector<8x128xf32> to vector<8x32xf32>
    %88 = vector.extract_strided_slice %78 {offsets = [0, 64], sizes = [8, 32], strides = [1, 1]} : vector<8x128xf32> to vector<8x32xf32>
    %89 = arith.mulf %85, %88 : vector<8x32xf32>
    %90 = arith.addf %87, %89 : vector<8x32xf32>
    %91 = math.tanh %90 : vector<8x32xf32>
    %92 = arith.subf %68, %91 : vector<8x32xf32>
    %93 = arith.mulf %86, %92 : vector<8x32xf32>
    %94 = arith.addf %91, %93 : vector<8x32xf32>
    %95 = arith.index_cast %c2_i32 : i32 to index
    %c0_31 = arith.constant 0 : index
    %c0_32 = arith.constant 0 : index
    %96 = vector.load %arg6[%95, %c0_31, %c0_32] : memref<8x8x32xf32, #tpu.memory_space<vmem>>, vector<1x8x32xf32>
    %97 = vector.shape_cast %96 : vector<1x8x32xf32> to vector<8x32xf32>
    %98 = vector.shape_cast %94 : vector<8x32xf32> to vector<1x8x32xf32>
    tpu.vector_store %arg6[%95, %c0_31, %c0_32], %98 {strides = array<i32>} : memref<8x8x32xf32, #tpu.memory_space<vmem>>, vector<1x8x32xf32>,
    %c3_i32 = arith.constant 3 : i32
    %99 = arith.index_cast %c3_i32 : i32 to index
    %c0_33 = arith.constant 0 : index
    %c0_34 = arith.constant 0 : index
    %100 = vector.load %arg5[%99, %c0_33, %c0_34] : memref<8x8x128xf32, #tpu.memory_space<vmem>>, vector<1x8x128xf32>
    %101 = vector.shape_cast %100 : vector<1x8x128xf32> to vector<8x128xf32>
    %cst_35 = arith.constant dense<0.000000e+00> : vector<8x128xf32>
    %102 = tpu.matmul %94, %19, %cst_35 {dimension_numbers = #tpu.dot_dimension_numbers<[1], [0], [0], [1], [0, 0, 1, 1], [], []>} : vector<8x32xf32>, vector<32x128xf32>, vector<8x128xf32> -> vector<8x128xf32>
    %103 = vector.broadcast %20 : vector<1x128xf32> to vector<8x128xf32>
    %104 = arith.addf %102, %103 : vector<8x128xf32>
    %105 = arith.addf %101, %104 : vector<8x128xf32>
    %106 = arith.negf %105 : vector<8x128xf32>
    %107 = math.exp %106 : vector<8x128xf32>
    %cst_36 = arith.constant 1.000000e+00 : f32
    %108 = vector.broadcast %cst_36 : f32 to vector<8x128xf32>
    %109 = arith.addf %108, %107 : vector<8x128xf32>
    %110 = arith.divf %108, %109 : vector<8x128xf32>
    %111 = vector.extract_strided_slice %110 {offsets = [0, 0], sizes = [8, 32], strides = [1, 1]} : vector<8x128xf32> to vector<8x32xf32>
    %112 = vector.extract_strided_slice %110 {offsets = [0, 32], sizes = [8, 32], strides = [1, 1]} : vector<8x128xf32> to vector<8x32xf32>
    %113 = vector.extract_strided_slice %101 {offsets = [0, 64], sizes = [8, 32], strides = [1, 1]} : vector<8x128xf32> to vector<8x32xf32>
    %114 = vector.extract_strided_slice %104 {offsets = [0, 64], sizes = [8, 32], strides = [1, 1]} : vector<8x128xf32> to vector<8x32xf32>
    %115 = arith.mulf %111, %114 : vector<8x32xf32>
    %116 = arith.addf %113, %115 : vector<8x32xf32>
    %117 = math.tanh %116 : vector<8x32xf32>
    %118 = arith.subf %94, %117 : vector<8x32xf32>
    %119 = arith.mulf %112, %118 : vector<8x32xf32>
    %120 = arith.addf %117, %119 : vector<8x32xf32>
    %121 = arith.index_cast %c3_i32 : i32 to index
    %c0_37 = arith.constant 0 : index
    %c0_38 = arith.constant 0 : index
    %122 = vector.load %arg6[%121, %c0_37, %c0_38] : memref<8x8x32xf32, #tpu.memory_space<vmem>>, vector<1x8x32xf32>
    %123 = vector.shape_cast %122 : vector<1x8x32xf32> to vector<8x32xf32>
    %124 = vector.shape_cast %120 : vector<8x32xf32> to vector<1x8x32xf32>
    tpu.vector_store %arg6[%121, %c0_37, %c0_38], %124 {strides = array<i32>} : memref<8x8x32xf32, #tpu.memory_space<vmem>>, vector<1x8x32xf32>,
    %c4_i32 = arith.constant 4 : i32
    %125 = arith.index_cast %c4_i32 : i32 to index
    %c0_39 = arith.constant 0 : index
    %c0_40 = arith.constant 0 : index
    %126 = vector.load %arg5[%125, %c0_39, %c0_40] : memref<8x8x128xf32, #tpu.memory_space<vmem>>, vector<1x8x128xf32>
    %127 = vector.shape_cast %126 : vector<1x8x128xf32> to vector<8x128xf32>
    %cst_41 = arith.constant dense<0.000000e+00> : vector<8x128xf32>
    %128 = tpu.matmul %120, %19, %cst_41 {dimension_numbers = #tpu.dot_dimension_numbers<[1], [0], [0], [1], [0, 0, 1, 1], [], []>} : vector<8x32xf32>, vector<32x128xf32>, vector<8x128xf32> -> vector<8x128xf32>
    %129 = vector.broadcast %20 : vector<1x128xf32> to vector<8x128xf32>
    %130 = arith.addf %128, %129 : vector<8x128xf32>
    %131 = arith.addf %127, %130 : vector<8x128xf32>
    %132 = arith.negf %131 : vector<8x128xf32>
    %133 = math.exp %132 : vector<8x128xf32>
    %cst_42 = arith.constant 1.000000e+00 : f32
    %134 = vector.broadcast %cst_42 : f32 to vector<8x128xf32>
    %135 = arith.addf %134, %133 : vector<8x128xf32>
    %136 = arith.divf %134, %135 : vector<8x128xf32>
    %137 = vector.extract_strided_slice %136 {offsets = [0, 0], sizes = [8, 32], strides = [1, 1]} : vector<8x128xf32> to vector<8x32xf32>
    %138 = vector.extract_strided_slice %136 {offsets = [0, 32], sizes = [8, 32], strides = [1, 1]} : vector<8x128xf32> to vector<8x32xf32>
    %139 = vector.extract_strided_slice %127 {offsets = [0, 64], sizes = [8, 32], strides = [1, 1]} : vector<8x128xf32> to vector<8x32xf32>
    %140 = vector.extract_strided_slice %130 {offsets = [0, 64], sizes = [8, 32], strides = [1, 1]} : vector<8x128xf32> to vector<8x32xf32>
    %141 = arith.mulf %137, %140 : vector<8x32xf32>
    %142 = arith.addf %139, %141 : vector<8x32xf32>
    %143 = math.tanh %142 : vector<8x32xf32>
    %144 = arith.subf %120, %143 : vector<8x32xf32>
    %145 = arith.mulf %138, %144 : vector<8x32xf32>
    %146 = arith.addf %143, %145 : vector<8x32xf32>
    %147 = arith.index_cast %c4_i32 : i32 to index
    %c0_43 = arith.constant 0 : index
    %c0_44 = arith.constant 0 : index
    %148 = vector.load %arg6[%147, %c0_43, %c0_44] : memref<8x8x32xf32, #tpu.memory_space<vmem>>, vector<1x8x32xf32>
    %149 = vector.shape_cast %148 : vector<1x8x32xf32> to vector<8x32xf32>
    %150 = vector.shape_cast %146 : vector<8x32xf32> to vector<1x8x32xf32>
    tpu.vector_store %arg6[%147, %c0_43, %c0_44], %150 {strides = array<i32>} : memref<8x8x32xf32, #tpu.memory_space<vmem>>, vector<1x8x32xf32>,
    %c5_i32 = arith.constant 5 : i32
    %151 = arith.index_cast %c5_i32 : i32 to index
    %c0_45 = arith.constant 0 : index
    %c0_46 = arith.constant 0 : index
    %152 = vector.load %arg5[%151, %c0_45, %c0_46] : memref<8x8x128xf32, #tpu.memory_space<vmem>>, vector<1x8x128xf32>
    %153 = vector.shape_cast %152 : vector<1x8x128xf32> to vector<8x128xf32>
    %cst_47 = arith.constant dense<0.000000e+00> : vector<8x128xf32>
    %154 = tpu.matmul %146, %19, %cst_47 {dimension_numbers = #tpu.dot_dimension_numbers<[1], [0], [0], [1], [0, 0, 1, 1], [], []>} : vector<8x32xf32>, vector<32x128xf32>, vector<8x128xf32> -> vector<8x128xf32>
    %155 = vector.broadcast %20 : vector<1x128xf32> to vector<8x128xf32>
    %156 = arith.addf %154, %155 : vector<8x128xf32>
    %157 = arith.addf %153, %156 : vector<8x128xf32>
    %158 = arith.negf %157 : vector<8x128xf32>
    %159 = math.exp %158 : vector<8x128xf32>
    %cst_48 = arith.constant 1.000000e+00 : f32
    %160 = vector.broadcast %cst_48 : f32 to vector<8x128xf32>
    %161 = arith.addf %160, %159 : vector<8x128xf32>
    %162 = arith.divf %160, %161 : vector<8x128xf32>
    %163 = vector.extract_strided_slice %162 {offsets = [0, 0], sizes = [8, 32], strides = [1, 1]} : vector<8x128xf32> to vector<8x32xf32>
    %164 = vector.extract_strided_slice %162 {offsets = [0, 32], sizes = [8, 32], strides = [1, 1]} : vector<8x128xf32> to vector<8x32xf32>
    %165 = vector.extract_strided_slice %153 {offsets = [0, 64], sizes = [8, 32], strides = [1, 1]} : vector<8x128xf32> to vector<8x32xf32>
    %166 = vector.extract_strided_slice %156 {offsets = [0, 64], sizes = [8, 32], strides = [1, 1]} : vector<8x128xf32> to vector<8x32xf32>
    %167 = arith.mulf %163, %166 : vector<8x32xf32>
    %168 = arith.addf %165, %167 : vector<8x32xf32>
    %169 = math.tanh %168 : vector<8x32xf32>
    %170 = arith.subf %146, %169 : vector<8x32xf32>
    %171 = arith.mulf %164, %170 : vector<8x32xf32>
    %172 = arith.addf %169, %171 : vector<8x32xf32>
    %173 = arith.index_cast %c5_i32 : i32 to index
    %c0_49 = arith.constant 0 : index
    %c0_50 = arith.constant 0 : index
    %174 = vector.load %arg6[%173, %c0_49, %c0_50] : memref<8x8x32xf32, #tpu.memory_space<vmem>>, vector<1x8x32xf32>
    %175 = vector.shape_cast %174 : vector<1x8x32xf32> to vector<8x32xf32>
    %176 = vector.shape_cast %172 : vector<8x32xf32> to vector<1x8x32xf32>
    tpu.vector_store %arg6[%173, %c0_49, %c0_50], %176 {strides = array<i32>} : memref<8x8x32xf32, #tpu.memory_space<vmem>>, vector<1x8x32xf32>,
    %c6_i32 = arith.constant 6 : i32
    %177 = arith.index_cast %c6_i32 : i32 to index
    %c0_51 = arith.constant 0 : index
    %c0_52 = arith.constant 0 : index
    %178 = vector.load %arg5[%177, %c0_51, %c0_52] : memref<8x8x128xf32, #tpu.memory_space<vmem>>, vector<1x8x128xf32>
    %179 = vector.shape_cast %178 : vector<1x8x128xf32> to vector<8x128xf32>
    %cst_53 = arith.constant dense<0.000000e+00> : vector<8x128xf32>
    %180 = tpu.matmul %172, %19, %cst_53 {dimension_numbers = #tpu.dot_dimension_numbers<[1], [0], [0], [1], [0, 0, 1, 1], [], []>} : vector<8x32xf32>, vector<32x128xf32>, vector<8x128xf32> -> vector<8x128xf32>
    %181 = vector.broadcast %20 : vector<1x128xf32> to vector<8x128xf32>
    %182 = arith.addf %180, %181 : vector<8x128xf32>
    %183 = arith.addf %179, %182 : vector<8x128xf32>
    %184 = arith.negf %183 : vector<8x128xf32>
    %185 = math.exp %184 : vector<8x128xf32>
    %cst_54 = arith.constant 1.000000e+00 : f32
    %186 = vector.broadcast %cst_54 : f32 to vector<8x128xf32>
    %187 = arith.addf %186, %185 : vector<8x128xf32>
    %188 = arith.divf %186, %187 : vector<8x128xf32>
    %189 = vector.extract_strided_slice %188 {offsets = [0, 0], sizes = [8, 32], strides = [1, 1]} : vector<8x128xf32> to vector<8x32xf32>
    %190 = vector.extract_strided_slice %188 {offsets = [0, 32], sizes = [8, 32], strides = [1, 1]} : vector<8x128xf32> to vector<8x32xf32>
    %191 = vector.extract_strided_slice %179 {offsets = [0, 64], sizes = [8, 32], strides = [1, 1]} : vector<8x128xf32> to vector<8x32xf32>
    %192 = vector.extract_strided_slice %182 {offsets = [0, 64], sizes = [8, 32], strides = [1, 1]} : vector<8x128xf32> to vector<8x32xf32>
    %193 = arith.mulf %189, %192 : vector<8x32xf32>
    %194 = arith.addf %191, %193 : vector<8x32xf32>
    %195 = math.tanh %194 : vector<8x32xf32>
    %196 = arith.subf %172, %195 : vector<8x32xf32>
    %197 = arith.mulf %190, %196 : vector<8x32xf32>
    %198 = arith.addf %195, %197 : vector<8x32xf32>
    %199 = arith.index_cast %c6_i32 : i32 to index
    %c0_55 = arith.constant 0 : index
    %c0_56 = arith.constant 0 : index
    %200 = vector.load %arg6[%199, %c0_55, %c0_56] : memref<8x8x32xf32, #tpu.memory_space<vmem>>, vector<1x8x32xf32>
    %201 = vector.shape_cast %200 : vector<1x8x32xf32> to vector<8x32xf32>
    %202 = vector.shape_cast %198 : vector<8x32xf32> to vector<1x8x32xf32>
    tpu.vector_store %arg6[%199, %c0_55, %c0_56], %202 {strides = array<i32>} : memref<8x8x32xf32, #tpu.memory_space<vmem>>, vector<1x8x32xf32>,
    %c7_i32 = arith.constant 7 : i32
    %203 = arith.index_cast %c7_i32 : i32 to index
    %c0_57 = arith.constant 0 : index
    %c0_58 = arith.constant 0 : index
    %204 = vector.load %arg5[%203, %c0_57, %c0_58] : memref<8x8x128xf32, #tpu.memory_space<vmem>>, vector<1x8x128xf32>
    %205 = vector.shape_cast %204 : vector<1x8x128xf32> to vector<8x128xf32>
    %cst_59 = arith.constant dense<0.000000e+00> : vector<8x128xf32>
    %206 = tpu.matmul %198, %19, %cst_59 {dimension_numbers = #tpu.dot_dimension_numbers<[1], [0], [0], [1], [0, 0, 1, 1], [], []>} : vector<8x32xf32>, vector<32x128xf32>, vector<8x128xf32> -> vector<8x128xf32>
    %207 = vector.broadcast %20 : vector<1x128xf32> to vector<8x128xf32>
    %208 = arith.addf %206, %207 : vector<8x128xf32>
    %209 = arith.addf %205, %208 : vector<8x128xf32>
    %210 = arith.negf %209 : vector<8x128xf32>
    %211 = math.exp %210 : vector<8x128xf32>
    %cst_60 = arith.constant 1.000000e+00 : f32
    %212 = vector.broadcast %cst_60 : f32 to vector<8x128xf32>
    %213 = arith.addf %212, %211 : vector<8x128xf32>
    %214 = arith.divf %212, %213 : vector<8x128xf32>
    %215 = vector.extract_strided_slice %214 {offsets = [0, 0], sizes = [8, 32], strides = [1, 1]} : vector<8x128xf32> to vector<8x32xf32>
    %216 = vector.extract_strided_slice %214 {offsets = [0, 32], sizes = [8, 32], strides = [1, 1]} : vector<8x128xf32> to vector<8x32xf32>
    %217 = vector.extract_strided_slice %205 {offsets = [0, 64], sizes = [8, 32], strides = [1, 1]} : vector<8x128xf32> to vector<8x32xf32>
    %218 = vector.extract_strided_slice %208 {offsets = [0, 64], sizes = [8, 32], strides = [1, 1]} : vector<8x128xf32> to vector<8x32xf32>
    %219 = arith.mulf %215, %218 : vector<8x32xf32>
    %220 = arith.addf %217, %219 : vector<8x32xf32>
    %221 = math.tanh %220 : vector<8x32xf32>
    %222 = arith.subf %198, %221 : vector<8x32xf32>
    %223 = arith.mulf %216, %222 : vector<8x32xf32>
    %224 = arith.addf %221, %223 : vector<8x32xf32>
    %225 = arith.index_cast %c7_i32 : i32 to index
    %c0_61 = arith.constant 0 : index
    %c0_62 = arith.constant 0 : index
    %226 = vector.load %arg6[%225, %c0_61, %c0_62] : memref<8x8x32xf32, #tpu.memory_space<vmem>>, vector<1x8x32xf32>
    %227 = vector.shape_cast %226 : vector<1x8x32xf32> to vector<8x32xf32>
    %228 = vector.shape_cast %224 : vector<8x32xf32> to vector<1x8x32xf32>
    tpu.vector_store %arg6[%225, %c0_61, %c0_62], %228 {strides = array<i32>} : memref<8x8x32xf32, #tpu.memory_space<vmem>>, vector<1x8x32xf32>,
    %c8_i32 = arith.constant 8 : i32
    %c96 = arith.constant 96 : index
    %c0_63 = arith.constant 0 : index
    %229 = vector.load %arg3[%c96, %c0_63] : memref<136x128xf32, #tpu.memory_space<vmem>>, vector<32x128xf32>
    %c128 = arith.constant 128 : index
    %c0_64 = arith.constant 0 : index
    %230 = vector.load %arg3[%c128, %c0_64] : memref<136x128xf32, #tpu.memory_space<vmem>>, vector<1x128xf32>
    %c0_65 = arith.constant 0 : index
    %c0_66 = arith.constant 0 : index
    %c0_67 = arith.constant 0 : index
    %231 = vector.load %arg6[%c0_65, %c0_66, %c0_67] : memref<8x8x32xf32, #tpu.memory_space<vmem>>, vector<8x8x32xf32>
    %232 = vector.shape_cast %231 : vector<8x8x32xf32> to vector<64x32xf32>
    %cst_68 = arith.constant dense<0.000000e+00> : vector<64x128xf32>
    %233 = tpu.matmul %232, %229, %cst_68 {dimension_numbers = #tpu.dot_dimension_numbers<[1], [0], [0], [1], [0, 0, 1, 1], [], []>} : vector<64x32xf32>, vector<32x128xf32>, vector<64x128xf32> -> vector<64x128xf32>
    %234 = vector.broadcast %230 : vector<1x128xf32> to vector<64x128xf32>
    %235 = arith.addf %233, %234 : vector<64x128xf32>
    %236 = vector.shape_cast %235 : vector<64x128xf32> to vector<8x8x128xf32>
    %c0_69 = arith.constant 0 : index
    %c0_70 = arith.constant 0 : index
    %c0_71 = arith.constant 0 : index
    %237 = vector.load %arg4[%c0_69, %c0_70, %c0_71] : memref<8x8x128xf32, #tpu.memory_space<vmem>>, vector<8x8x128xf32>
    tpu.vector_store %arg4[%c0_69, %c0_70, %c0_71], %236 {strides = array<i32>} : memref<8x8x128xf32, #tpu.memory_space<vmem>>, vector<8x8x128xf32>,
    return
  }
  func.func @transform_0(%arg0: i32) -> (i32, i32, i32) {
    %c0_i32 = arith.constant 0 : i32
    %c0_i32_0 = arith.constant 0 : i32
    %c0_i32_1 = arith.constant 0 : i32
    return %arg0, %c0_i32, %c0_i32_0 : i32, i32, i32
  }
  func.func @transform_1(%arg0: i32) -> (i32, i32) {
    %c0_i32 = arith.constant 0 : i32
    %c0_i32_0 = arith.constant 0 : i32
    return %arg0, %c0_i32 : i32, i32
  }
  func.func @transform_2(%arg0: i32) -> (i32, i32) {
    %c0_i32 = arith.constant 0 : i32
    %c0_i32_0 = arith.constant 0 : i32
    %c0_i32_1 = arith.constant 0 : i32
    return %c0_i32, %c0_i32_0 : i32, i32
  }
  func.func @transform_3(%arg0: i32) -> (i32, i32, i32) {
    %c0_i32 = arith.constant 0 : i32
    %c0_i32_0 = arith.constant 0 : i32
    %c0_i32_1 = arith.constant 0 : i32
    return %c0_i32, %arg0, %c0_i32_0 : i32, i32, i32
  }
}

</mosaic_0001>

<llo_original>
// kernel: decoder_forward.1
$region0: #{decoder_forward.1}
  #allocation0 [shape = 'u32[]', space=smem, size = 0x4, offset = 0x4, fixed_abs, tag = 'smem constant byte address 0x4 - core index']
  #allocation1 [shape = 'u32[144,128]{1,0:T(1,128)}', space=vmem, size = 0x12000, scoped, tag = 'internal scratch']
  #allocation2 [shape = 'f32[8,8,128]{2,1,0:T(8,128)}', space=vmem, size = 0x8000, scoped, tag = 'scratch operand']
  #allocation3 [shape = 'f32[8,8,32]{2,1,0:T(8,128)}', space=vmem, size = 0x8000, scoped, tag = 'scratch operand']
  %s0 = inlined_call_operand.vmem [shape: s32[1,64,1], index: 0, kind: input, shape index: {}]
  %s1 = inlined_call_operand.vmem [shape: f32[8,16], index: 1, kind: input, shape index: {}]
  %s2 = inlined_call_operand.vmem [shape: f32[136,128], index: 2, kind: input, shape index: {}]
  %s3 = inlined_call_operand.vmem [shape: f32[8,8,128], index: 3, kind: output, shape index: {}]
  %s4 = sld [smem:[#allocation0]]
  $region22: #{decoder_forward.1} parent=0
    _
  %s6 = ssub.s32 1, %s4
  %s7 = scalar_select 0, %s6, %s4
  // Predicated region
  $region2: #{decoder_forward.1} parent=0 // pred_check
    _
  $region3: #{decoder_forward.1} parent=0 // pred_check_branch
    %9 = sbr.rel (0) target = $region5
  $region4: #{decoder_forward.1} parent=0 // pred_region
    _
  $region5: #{decoder_forward.1} parent=0 // pred_fallthru
    _
  // Predicated region
  $region6: #{decoder_forward.1} parent=0 // pred_check
    _
  $region7: #{decoder_forward.1} parent=0 // pred_check_branch
    %11 = sbr.rel (0) target = $region9
  $region8: #{decoder_forward.1} parent=0 // pred_region
    _
  $region9: #{decoder_forward.1} parent=0 // pred_fallthru
    _
  // Predicated region
  $region10: #{decoder_forward.1} parent=0 // pred_check
    _
  $region11: #{decoder_forward.1} parent=0 // pred_check_branch
    %13 = sbr.rel (0) target = $region13
  $region12: #{decoder_forward.1} parent=0 // pred_region
    _
  $region13: #{decoder_forward.1} parent=0 // pred_fallthru
    _
  %v14 = vld [vmem:[%s2] sm:$0xff]
  %v15 = vld [vmem:[%s2 + $0x8] sm:$0xff]
  %v16 = vld [vmem:[%s2 + $0x10] sm:$0x1]
  %v17 = vld [vmem:[%s1] sm:$0xff]
  %v18 = vlaneseq
  %v19 = vshrl.u32 %v18, 7
  %v20 = vsub.s32 0, %v19
  %v21 = vrot.slane %v16, %v20
  %vm22 = vcmask 130048
  %v24 = vsel %vm22, %v17, 0
  %26 = vmatprep.subr.mxu0 0.0
  %27 = vmatpush1.msra.mxu0 %v14
  %28 = vmatprep.subr.mxu0 0.0
  %29 = vmatpush1.msra.mxu0 %v15
  %30 = vmatprep.subr.mxu0 0.0
  %31 = vmatpush1.msra.mxu0 0.0
  %32 = vmatprep.subr.mxu0 0.0
  %33 = vmatpush1.msra.mxu0 0.0
  %34 = vmatprep.subr.mxu0 0.0
  %35 = vmatpush1.msra.mxu0 0.0
  %36 = vmatprep.subr.mxu0 0.0
  %37 = vmatpush1.msra.mxu0 0.0
  %38 = vmatprep.subr.mxu0 0.0
  %39 = vmatpush1.msra.mxu0 0.0
  %40 = vmatprep.subr.mxu0 0.0
  %41 = vmatpush1.msra.mxu0 0.0
  %42 = vmatprep.subr.mxu0 0.0
  %43 = vmatpush1.msra.mxu0 0.0
  %44 = vmatprep.subr.mxu0 0.0
  %45 = vmatpush1.msra.mxu0 0.0
  %46 = vmatprep.subr.mxu0 0.0
  %47 = vmatpush1.msra.mxu0 0.0
  %48 = vmatprep.subr.mxu0 0.0
  %49 = vmatpush1.msra.mxu0 0.0
  %50 = vmatprep.subr.mxu0 0.0
  %51 = vmatpush1.msra.mxu0 0.0
  %52 = vmatprep.subr.mxu0 0.0
  %53 = vmatpush1.msra.mxu0 0.0
  %54 = vmatprep.subr.mxu0 0.0
  %55 = vmatpush1.msra.mxu0 0.0
  %56 = vmatprep.subr.mxu0 0.0
  %57 = vmatpush1.msra.mxu0 0.0
  %58 = vmatprep.subr.mxu0 0.0
  %59 = vmatpush1.msra.mxu0 0.0
  %60 = vmatprep.subr.mxu0 0.0
  %61 = vmatpush1.msra.mxu0 0.0
  %62 = vmatprep.subr.mxu0 0.0
  %63 = vmatpush1.msra.mxu0 0.0
  %64 = vmatprep.subr.mxu0 0.0
  %65 = vmatpush1.msra.mxu0 0.0
  %66 = vmatprep.subr.mxu0 0.0
  %67 = vmatpush1.msra.mxu0 0.0
  %68 = vmatprep.subr.mxu0 0.0
  %69 = vmatpush1.msra.mxu0 0.0
  %70 = vmatprep.subr.mxu0 0.0
  %71 = vmatpush1.msra.mxu0 0.0
  %72 = vmatprep.subr.mxu0 0.0
  %73 = vmatpush1.msra.mxu0 0.0
  %74 = vmatprep.subr.mxu0 0.0
  %75 = vmatpush1.msra.mxu0 0.0
  %76 = vmatprep.subr.mxu0 0.0
  %77 = vmatpush1.msra.mxu0 0.0
  %78 = vmatprep.subr.mxu0 0.0
  %79 = vmatpush1.msra.mxu0 0.0
  %80 = vmatprep.subr.mxu0 0.0
  %81 = vmatpush1.msra.mxu0 0.0
  %82 = vmatprep.subr.mxu0 0.0
  %83 = vmatpush1.msra.mxu0 0.0
  %84 = vmatprep.subr.mxu0 0.0
  %85 = vmatpush1.msra.mxu0 0.0
  %86 = vmatprep.subr.mxu0 0.0
  %87 = vmatpush1.msra.mxu0 0.0
  %88 = vmatprep.subr.mxu0 0.0
  %89 = vmatpush1.msra.mxu0 0.0
  %90 = vmatprep.mubr.f32.mxu0 0.0
  %91 = vmatmul.mubr.f32.gmra.mrb[0].mxu0 %v24
  %v92 = vpop.f32.mrb[0].mxu0
  %v93 = vadd.f32 %v21, %v92
  %v94 = vpop.f32.mrb[0].mxu0
  %95 = vdwg.mxu0
  %v96 = vmax.f32 %v93, 0.0
  %v97 = vld [vmem:[%s0] sm:$0xff]
  %v98 = vld [vmem:[%s0 + $0x8] sm:$0xff]
  %v99 = vld [vmem:[%s0 + $0x10] sm:$0xff]
  %v100 = vld [vmem:[%s0 + $0x18] sm:$0xff]
  %v101 = vld [vmem:[%s0 + $0x20] sm:$0xff]
  %v102 = vld [vmem:[%s0 + $0x28] sm:$0xff]
  %v103 = vld [vmem:[%s0 + $0x30] sm:$0xff]
  %v104 = vld [vmem:[%s0 + $0x38] sm:$0xff]
  %v105 = vlaneseq
  %v106 = vand.u32 %v105, 127
  %107 = vset.pattern.permute.xlu0 0
  %108 = vperm.xlu0 %107, %v97
  %v109 = vpop.permute.xlu0 %108
  %110 = vset.pattern.permute.xlu0 0
  %111 = vperm.xlu0 %110, %v98
  %v112 = vpop.permute.xlu0 %111
  %113 = vset.pattern.permute.xlu0 0
  %114 = vperm.xlu0 %113, %v99
  %v115 = vpop.permute.xlu0 %114
  %116 = vset.pattern.permute.xlu0 0
  %117 = vperm.xlu0 %116, %v100
  %v118 = vpop.permute.xlu0 %117
  %119 = vset.pattern.permute.xlu0 0
  %120 = vperm.xlu0 %119, %v101
  %v121 = vpop.permute.xlu0 %120
  %122 = vset.pattern.permute.xlu0 0
  %123 = vperm.xlu0 %122, %v102
  %v124 = vpop.permute.xlu0 %123
  %125 = vset.pattern.permute.xlu0 0
  %126 = vperm.xlu0 %125, %v103
  %v127 = vpop.permute.xlu0 %126
  %128 = vset.pattern.permute.xlu0 0
  %129 = vperm.xlu0 %128, %v104
  %v130 = vpop.permute.xlu0 %129
  %vm131 = vcmp.eq.s32.totalorder %v109, %v106
  %vm132 = vcmp.eq.s32.totalorder %v112, %v106
  %vm133 = vcmp.eq.s32.totalorder %v115, %v106
  %vm134 = vcmp.eq.s32.totalorder %v118, %v106
  %vm135 = vcmp.eq.s32.totalorder %v121, %v106
  %vm136 = vcmp.eq.s32.totalorder %v124, %v106
  %vm137 = vcmp.eq.s32.totalorder %v127, %v106
  %vm138 = vcmp.eq.s32.totalorder %v130, %v106
  %v139 = vsel %vm131, 1, 0
  %v140 = vsel %vm132, 1, 0
  %v141 = vsel %vm133, 1, 0
  %v142 = vsel %vm134, 1, 0
  %v143 = vsel %vm135, 1, 0
  %v144 = vsel %vm136, 1, 0
  %v145 = vsel %vm137, 1, 0
  %v146 = vsel %vm138, 1, 0
  %v147 = vcvt.s32.f32 %v139
  %v148 = vcvt.s32.f32 %v140
  %v149 = vcvt.s32.f32 %v141
  %v150 = vcvt.s32.f32 %v142
  %v151 = vcvt.s32.f32 %v143
  %v152 = vcvt.s32.f32 %v144
  %v153 = vcvt.s32.f32 %v145
  %v154 = vcvt.s32.f32 %v146
  %v155 = vld [vmem:[%s2 + $0x18] sm:$0xff]
  %v156 = vld [vmem:[%s2 + $0x20] sm:$0xff]
  %v157 = vld [vmem:[%s2 + $0x28] sm:$0xff]
  %v158 = vld [vmem:[%s2 + $0x30] sm:$0xff]
  %vm159 = vcmask 261120
  %v161 = vsel %vm159, %v147, 0
  %v164 = vsel %vm159, %v148, 0
  %v167 = vsel %vm159, %v149, 0
  %v170 = vsel %vm159, %v150, 0
  %v173 = vsel %vm159, %v151, 0
  %v176 = vsel %vm159, %v152, 0
  %v179 = vsel %vm159, %v153, 0
  %v182 = vsel %vm159, %v154, 0
  %184 = vmatprep.subr.mxu0 0.0
  %185 = vmatpush1.msra.mxu0 %v155
  %186 = vmatprep.subr.mxu0 0.0
  %187 = vmatpush1.msra.mxu0 %v156
  %188 = vmatprep.subr.mxu0 0.0
  %189 = vmatpush1.msra.mxu0 %v157
  %190 = vmatprep.subr.mxu0 0.0
  %191 = vmatpush1.msra.mxu0 %v158
  %192 = vmatprep.subr.mxu0 0.0
  %193 = vmatpush1.msra.mxu0 0.0
  %194 = vmatprep.subr.mxu0 0.0
  %195 = vmatpush1.msra.mxu0 0.0
  %196 = vmatprep.subr.mxu0 0.0
  %197 = vmatpush1.msra.mxu0 0.0
  %198 = vmatprep.subr.mxu0 0.0
  %199 = vmatpush1.msra.mxu0 0.0
  %200 = vmatprep.subr.mxu0 0.0
  %201 = vmatpush1.msra.mxu0 0.0
  %202 = vmatprep.subr.mxu0 0.0
  %203 = vmatpush1.msra.mxu0 0.0
  %204 = vmatprep.subr.mxu0 0.0
  %205 = vmatpush1.msra.mxu0 0.0
  %206 = vmatprep.subr.mxu0 0.0
  %207 = vmatpush1.msra.mxu0 0.0
  %208 = vmatprep.subr.mxu0 0.0
  %209 = vmatpush1.msra.mxu0 0.0
  %210 = vmatprep.subr.mxu0 0.0
  %211 = vmatpush1.msra.mxu0 0.0
  %212 = vmatprep.subr.mxu0 0.0
  %213 = vmatpush1.msra.mxu0 0.0
  %214 = vmatprep.subr.mxu0 0.0
  %215 = vmatpush1.msra.mxu0 0.0
  %216 = vmatprep.subr.mxu0 0.0
  %217 = vmatpush1.msra.mxu0 0.0
  %218 = vmatprep.subr.mxu0 0.0
  %219 = vmatpush1.msra.mxu0 0.0
  %220 = vmatprep.subr.mxu0 0.0
  %221 = vmatpush1.msra.mxu0 0.0
  %222 = vmatprep.subr.mxu0 0.0
  %223 = vmatpush1.msra.mxu0 0.0
  %224 = vmatprep.subr.mxu0 0.0
  %225 = vmatpush1.msra.mxu0 0.0
  %226 = vmatprep.subr.mxu0 0.0
  %227 = vmatpush1.msra.mxu0 0.0
  %228 = vmatprep.subr.mxu0 0.0
  %229 = vmatpush1.msra.mxu0 0.0
  %230 = vmatprep.subr.mxu0 0.0
  %231 = vmatpush1.msra.mxu0 0.0
  %232 = vmatprep.subr.mxu0 0.0
  %233 = vmatpush1.msra.mxu0 0.0
  %234 = vmatprep.subr.mxu0 0.0
  %235 = vmatpush1.msra.mxu0 0.0
  %236 = vmatprep.subr.mxu0 0.0
  %237 = vmatpush1.msra.mxu0 0.0
  %238 = vmatprep.subr.mxu0 0.0
  %239 = vmatpush1.msra.mxu0 0.0
  %240 = vmatprep.subr.mxu0 0.0
  %241 = vmatpush1.msra.mxu0 0.0
  %242 = vmatprep.subr.mxu0 0.0
  %243 = vmatpush1.msra.mxu0 0.0
  %244 = vmatprep.subr.mxu0 0.0
  %245 = vmatpush1.msra.mxu0 0.0
  %246 = vmatprep.subr.mxu0 0.0
  %247 = vmatpush1.msra.mxu0 0.0
  %248 = vmatprep.mubr.f32.mxu0 0.0
  %249 = vmatmul.mubr.f32.gmra.mrb[0].mxu0 %v161
  %v250 = vpop.f32.mrb[0].mxu0
  %v251 = vadd.f32 0.0, %v250
  %v252 = vpop.f32.mrb[0].mxu0
  %253 = vmatprep.mubr.f32.mxu0 0.0
  %254 = vmatmul.mubr.f32.gmra.mrb[0].mxu0 %v164
  %v255 = vpop.f32.mrb[0].mxu0
  %v256 = vadd.f32 0.0, %v255
  %v257 = vpop.f32.mrb[0].mxu0
  %258 = vmatprep.mubr.f32.mxu0 0.0
  %259 = vmatmul.mubr.f32.gmra.mrb[0].mxu0 %v167
  %v260 = vpop.f32.mrb[0].mxu0
  %v261 = vadd.f32 0.0, %v260
  %v262 = vpop.f32.mrb[0].mxu0
  %263 = vmatprep.mubr.f32.mxu0 0.0
  %264 = vmatmul.mubr.f32.gmra.mrb[0].mxu0 %v170
  %v265 = vpop.f32.mrb[0].mxu0
  %v266 = vadd.f32 0.0, %v265
  %v267 = vpop.f32.mrb[0].mxu0
  %268 = vmatprep.mubr.f32.mxu0 0.0
  %269 = vmatmul.mubr.f32.gmra.mrb[0].mxu0 %v173
  %v270 = vpop.f32.mrb[0].mxu0
  %v271 = vadd.f32 0.0, %v270
  %v272 = vpop.f32.mrb[0].mxu0
  %273 = vmatprep.mubr.f32.mxu0 0.0
  %274 = vmatmul.mubr.f32.gmra.mrb[0].mxu0 %v176
  %v275 = vpop.f32.mrb[0].mxu0
  %v276 = vadd.f32 0.0, %v275
  %v277 = vpop.f32.mrb[0].mxu0
  %278 = vmatprep.mubr.f32.mxu0 0.0
  %279 = vmatmul.mubr.f32.gmra.mrb[0].mxu0 %v179
  %v280 = vpop.f32.mrb[0].mxu0
  %v281 = vadd.f32 0.0, %v280
  %v282 = vpop.f32.mrb[0].mxu0
  %283 = vmatprep.mubr.f32.mxu0 0.0
  %284 = vmatmul.mubr.f32.gmra.mrb[0].mxu0 %v182
  %v285 = vpop.f32.mrb[0].mxu0
  %v286 = vadd.f32 0.0, %v285
  %v287 = vpop.f32.mrb[0].mxu0
  %288 = vdwg.mxu0
  %289 = vst [vmem:[#allocation2] sm:$0xff] %v251
  %290 = vst [vmem:[#allocation2 + $0x8] sm:$0xff] %v256
  %291 = vst [vmem:[#allocation2 + $0x10] sm:$0xff] %v261
  %292 = vst [vmem:[#allocation2 + $0x18] sm:$0xff] %v266
  %293 = vst [vmem:[#allocation2 + $0x20] sm:$0xff] %v271
  %294 = vst [vmem:[#allocation2 + $0x28] sm:$0xff] %v276
  %295 = vst [vmem:[#allocation2 + $0x30] sm:$0xff] %v281
  %296 = vst [vmem:[#allocation2 + $0x38] sm:$0xff] %v286
  %v297 = vld [vmem:[%s2 + $0x38] sm:$0xff]
  %v298 = vld [vmem:[%s2 + $0x40] sm:$0xff]
  %v299 = vld [vmem:[%s2 + $0x48] sm:$0xff]
  %v300 = vld [vmem:[%s2 + $0x50] sm:$0xff]
  %v301 = vld [vmem:[%s2 + $0x58] sm:$0x1]
  %v302 = vld [vmem:[#allocation2] sm:$0xff]
  %v303 = vlaneseq
  %v304 = vshrl.u32 %v303, 7
  %v305 = vsub.s32 0, %v304
  %v306 = vrot.slane %v301, %v305
  %v308 = vsel %vm159, %v96, 0
  %310 = vmatprep.subr.mxu0 0.0
  %311 = vmatpush1.msra.mxu0 %v297
  %312 = vmatprep.subr.mxu0 0.0
  %313 = vmatpush1.msra.mxu0 %v298
  %314 = vmatprep.subr.mxu0 0.0
  %315 = vmatpush1.msra.mxu0 %v299
  %316 = vmatprep.subr.mxu0 0.0
  %317 = vmatpush1.msra.mxu0 %v300
  %318 = vmatprep.subr.mxu0 0.0
  %319 = vmatpush1.msra.mxu0 0.0
  %320 = vmatprep.subr.mxu0 0.0
  %321 = vmatpush1.msra.mxu0 0.0
  %322 = vmatprep.subr.mxu0 0.0
  %323 = vmatpush1.msra.mxu0 0.0
  %324 = vmatprep.subr.mxu0 0.0
  %325 = vmatpush1.msra.mxu0 0.0
  %326 = vmatprep.subr.mxu0 0.0
  %327 = vmatpush1.msra.mxu0 0.0
  %328 = vmatprep.subr.mxu0 0.0
  %329 = vmatpush1.msra.mxu0 0.0
  %330 = vmatprep.subr.mxu0 0.0
  %331 = vmatpush1.msra.mxu0 0.0
  %332 = vmatprep.subr.mxu0 0.0
  %333 = vmatpush1.msra.mxu0 0.0
  %334 = vmatprep.subr.mxu0 0.0
  %335 = vmatpush1.msra.mxu0 0.0
  %336 = vmatprep.subr.mxu0 0.0
  %337 = vmatpush1.msra.mxu0 0.0
  %338 = vmatprep.subr.mxu0 0.0
  %339 = vmatpush1.msra.mxu0 0.0
  %340 = vmatprep.subr.mxu0 0.0
  %341 = vmatpush1.msra.mxu0 0.0
  %342 = vmatprep.subr.mxu0 0.0
  %343 = vmatpush1.msra.mxu0 0.0
  %344 = vmatprep.subr.mxu0 0.0
  %345 = vmatpush1.msra.mxu0 0.0
  %346 = vmatprep.subr.mxu0 0.0
  %347 = vmatpush1.msra.mxu0 0.0
  %348 = vmatprep.subr.mxu0 0.0
  %349 = vmatpush1.msra.mxu0 0.0
  %350 = vmatprep.subr.mxu0 0.0
  %351 = vmatpush1.msra.mxu0 0.0
  %352 = vmatprep.subr.mxu0 0.0
  %353 = vmatpush1.msra.mxu0 0.0
  %354 = vmatprep.subr.mxu0 0.0
  %355 = vmatpush1.msra.mxu0 0.0
  %356 = vmatprep.subr.mxu0 0.0
  %357 = vmatpush1.msra.mxu0 0.0
  %358 = vmatprep.subr.mxu0 0.0
  %359 = vmatpush1.msra.mxu0 0.0
  %360 = vmatprep.subr.mxu0 0.0
  %361 = vmatpush1.msra.mxu0 0.0
  %362 = vmatprep.subr.mxu0 0.0
  %363 = vmatpush1.msra.mxu0 0.0
  %364 = vmatprep.subr.mxu0 0.0
  %365 = vmatpush1.msra.mxu0 0.0
  %366 = vmatprep.subr.mxu0 0.0
  %367 = vmatpush1.msra.mxu0 0.0
  %368 = vmatprep.subr.mxu0 0.0
  %369 = vmatpush1.msra.mxu0 0.0
  %370 = vmatprep.subr.mxu0 0.0
  %371 = vmatpush1.msra.mxu0 0.0
  %372 = vmatprep.subr.mxu0 0.0
  %373 = vmatpush1.msra.mxu0 0.0
  %374 = vmatprep.mubr.f32.mxu0 0.0
  %375 = vmatmul.mubr.f32.gmra.mrb[0].mxu0 %v308
  %v376 = vpop.f32.mrb[0].mxu0
  %v377 = vadd.f32 %v306, %v376
  %v378 = vpop.f32.mrb[0].mxu0
  %379 = vdwg.mxu0
  %v380 = vadd.f32 %v302, %v377
  %v381 = vxor.u32 %v380, 2147483648
  %v382 = vmul.f32 %v381, 1.442695
  %v383 = vpow.pop %v382
  %v384 = vadd.f32 %v383, 1.0
  %v385 = vrcp.pop %v384
  %v386 = vmul.f32 1.0, %v385
  %388 = vrot.lane.b32.xlu0 %v377, 64
  %v389 = vpop.permute.xlu0 %388
  %v391 = vmul.f32 %v386, %v389
  %393 = vrot.lane.b32.xlu0 %v391, 64
  %v394 = vpop.permute.xlu0 %393
  %v396 = vadd.f32 %v302, %v394
  %v397 = vtanh.pop %v396
  %399 = vrot.lane.b32.xlu0 %v397, 64
  %v400 = vpop.permute.xlu0 %399
  %v402 = vsub.f32 %v96, %v400
  %404 = vrot.lane.b32.xlu0 %v402, 32
  %v405 = vpop.permute.xlu0 %404
  %v407 = vmul.f32 %v386, %v405
  %409 = vrot.lane.b32.xlu0 %v407, 32
  %v410 = vpop.permute.xlu0 %409
  %v412 = vadd.f32 %v397, %v410
  %414 = vrot.lane.b32.xlu0 %v412, 64
  %v415 = vpop.permute.xlu0 %414
  %417 = vst.msk [vmem:[#allocation3] sm:$0xff] %vm159, %v415
  %s418 = scalar_lea.vmem [#allocation2], 8
  %v419 = vld [vmem:[%s418] sm:$0xff]
  %v420 = vsel %vm159, %v415, 0
  %422 = vmatprep.subr.mxu0 0.0
  %423 = vmatpush1.msra.mxu0 %v297
  %424 = vmatprep.subr.mxu0 0.0
  %425 = vmatpush1.msra.mxu0 %v298
  %426 = vmatprep.subr.mxu0 0.0
  %427 = vmatpush1.msra.mxu0 %v299
  %428 = vmatprep.subr.mxu0 0.0
  %429 = vmatpush1.msra.mxu0 %v300
  %430 = vmatprep.subr.mxu0 0.0
  %431 = vmatpush1.msra.mxu0 0.0
  %432 = vmatprep.subr.mxu0 0.0
  %433 = vmatpush1.msra.mxu0 0.0
  %434 = vmatprep.subr.mxu0 0.0
  %435 = vmatpush1.msra.mxu0 0.0
  %436 = vmatprep.subr.mxu0 0.0
  %437 = vmatpush1.msra.mxu0 0.0
  %438 = vmatprep.subr.mxu0 0.0
  %439 = vmatpush1.msra.mxu0 0.0
  %440 = vmatprep.subr.mxu0 0.0
  %441 = vmatpush1.msra.mxu0 0.0
  %442 = vmatprep.subr.mxu0 0.0
  %443 = vmatpush1.msra.mxu0 0.0
  %444 = vmatprep.subr.mxu0 0.0
  %445 = vmatpush1.msra.mxu0 0.0
  %446 = vmatprep.subr.mxu0 0.0
  %447 = vmatpush1.msra.mxu0 0.0
  %448 = vmatprep.subr.mxu0 0.0
  %449 = vmatpush1.msra.mxu0 0.0
  %450 = vmatprep.subr.mxu0 0.0
  %451 = vmatpush1.msra.mxu0 0.0
  %452 = vmatprep.subr.mxu0 0.0
  %453 = vmatpush1.msra.mxu0 0.0
  %454 = vmatprep.subr.mxu0 0.0
  %455 = vmatpush1.msra.mxu0 0.0
  %456 = vmatprep.subr.mxu0 0.0
  %457 = vmatpush1.msra.mxu0 0.0
  %458 = vmatprep.subr.mxu0 0.0
  %459 = vmatpush1.msra.mxu0 0.0
  %460 = vmatprep.subr.mxu0 0.0
  %461 = vmatpush1.msra.mxu0 0.0
  %462 = vmatprep.subr.mxu0 0.0
  %463 = vmatpush1.msra.mxu0 0.0
  %464 = vmatprep.subr.mxu0 0.0
  %465 = vmatpush1.msra.mxu0 0.0
  %466 = vmatprep.subr.mxu0 0.0
  %467 = vmatpush1.msra.mxu0 0.0
  %468 = vmatprep.subr.mxu0 0.0
  %469 = vmatpush1.msra.mxu0 0.0
  %470 = vmatprep.subr.mxu0 0.0
  %471 = vmatpush1.msra.mxu0 0.0
  %472 = vmatprep.subr.mxu0 0.0
  %473 = vmatpush1.msra.mxu0 0.0
  %474 = vmatprep.subr.mxu0 0.0
  %475 = vmatpush1.msra.mxu0 0.0
  %476 = vmatprep.subr.mxu0 0.0
  %477 = vmatpush1.msra.mxu0 0.0
  %478 = vmatprep.subr.mxu0 0.0
  %479 = vmatpush1.msra.mxu0 0.0
  %480 = vmatprep.subr.mxu0 0.0
  %481 = vmatpush1.msra.mxu0 0.0
  %482 = vmatprep.subr.mxu0 0.0
  %483 = vmatpush1.msra.mxu0 0.0
  %484 = vmatprep.subr.mxu0 0.0
  %485 = vmatpush1.msra.mxu0 0.0
  %486 = vmatprep.mubr.f32.mxu0 0.0
  %487 = vmatmul.mubr.f32.gmra.mrb[0].mxu0 %v420
  %v488 = vpop.f32.mrb[0].mxu0
  %v489 = vadd.f32 %v306, %v488
  %v490 = vpop.f32.mrb[0].mxu0
  %491 = vdwg.mxu0
  %v492 = vadd.f32 %v419, %v489
  %v493 = vxor.u32 %v492, 2147483648
  %v494 = vmul.f32 %v493, 1.442695
  %v495 = vpow.pop %v494
  %v496 = vadd.f32 %v495, 1.0
  %v497 = vrcp.pop %v496
  %v498 = vmul.f32 1.0, %v497
  %500 = vrot.lane.b32.xlu0 %v489, 64
  %v501 = vpop.permute.xlu0 %500
  %v503 = vmul.f32 %v498, %v501
  %505 = vrot.lane.b32.xlu0 %v503, 64
  %v506 = vpop.permute.xlu0 %505
  %v508 = vadd.f32 %v419, %v506
  %v509 = vtanh.pop %v508
  %v510 = vsub.f32 %v412, %v509
  %512 = vrot.lane.b32.xlu0 %v510, 96
  %v513 = vpop.permute.xlu0 %512
  %v515 = vmul.f32 %v498, %v513
  %517 = vrot.lane.b32.xlu0 %v515, 32
  %v518 = vpop.permute.xlu0 %517
  %v520 = vadd.f32 %v509, %v518
  %522 = vrot.lane.b32.xlu0 %v520, 64
  %v523 = vpop.permute.xlu0 %522
  %s525 = scalar_lea.vmem [#allocation3], 8
  %526 = vst.msk [vmem:[%s525] sm:$0xff] %vm159, %v523
  %s527 = scalar_lea.vmem [#allocation2], 16
  %v528 = vld [vmem:[%s527] sm:$0xff]
  %v529 = vsel %vm159, %v523, 0
  %531 = vmatprep.subr.mxu0 0.0
  %532 = vmatpush1.msra.mxu0 %v297
  %533 = vmatprep.subr.mxu0 0.0
  %534 = vmatpush1.msra.mxu0 %v298
  %535 = vmatprep.subr.mxu0 0.0
  %536 = vmatpush1.msra.mxu0 %v299
  %537 = vmatprep.subr.mxu0 0.0
  %538 = vmatpush1.msra.mxu0 %v300
  %539 = vmatprep.subr.mxu0 0.0
  %540 = vmatpush1.msra.mxu0 0.0
  %541 = vmatprep.subr.mxu0 0.0
  %542 = vmatpush1.msra.mxu0 0.0
  %543 = vmatprep.subr.mxu0 0.0
  %544 = vmatpush1.msra.mxu0 0.0
  %545 = vmatprep.subr.mxu0 0.0
  %546 = vmatpush1.msra.mxu0 0.0
  %547 = vmatprep.subr.mxu0 0.0
  %548 = vmatpush1.msra.mxu0 0.0
  %549 = vmatprep.subr.mxu0 0.0
  %550 = vmatpush1.msra.mxu0 0.0
  %551 = vmatprep.subr.mxu0 0.0
  %552 = vmatpush1.msra.mxu0 0.0
  %553 = vmatprep.subr.mxu0 0.0
  %554 = vmatpush1.msra.mxu0 0.0
  %555 = vmatprep.subr.mxu0 0.0
  %556 = vmatpush1.msra.mxu0 0.0
  %557 = vmatprep.subr.mxu0 0.0
  %558 = vmatpush1.msra.mxu0 0.0
  %559 = vmatprep.subr.mxu0 0.0
  %560 = vmatpush1.msra.mxu0 0.0
  %561 = vmatprep.subr.mxu0 0.0
  %562 = vmatpush1.msra.mxu0 0.0
  %563 = vmatprep.subr.mxu0 0.0
  %564 = vmatpush1.msra.mxu0 0.0
  %565 = vmatprep.subr.mxu0 0.0
  %566 = vmatpush1.msra.mxu0 0.0
  %567 = vmatprep.subr.mxu0 0.0
  %568 = vmatpush1.msra.mxu0 0.0
  %569 = vmatprep.subr.mxu0 0.0
  %570 = vmatpush1.msra.mxu0 0.0
  %571 = vmatprep.subr.mxu0 0.0
  %572 = vmatpush1.msra.mxu0 0.0
  %573 = vmatprep.subr.mxu0 0.0
  %574 = vmatpush1.msra.mxu0 0.0
  %575 = vmatprep.subr.mxu0 0.0
  %576 = vmatpush1.msra.mxu0 0.0
  %577 = vmatprep.subr.mxu0 0.0
  %578 = vmatpush1.msra.mxu0 0.0
  %579 = vmatprep.subr.mxu0 0.0
  %580 = vmatpush1.msra.mxu0 0.0
  %581 = vmatprep.subr.mxu0 0.0
  %582 = vmatpush1.msra.mxu0 0.0
  %583 = vmatprep.subr.mxu0 0.0
  %584 = vmatpush1.msra.mxu0 0.0
  %585 = vmatprep.subr.mxu0 0.0
  %586 = vmatpush1.msra.mxu0 0.0
  %587 = vmatprep.subr.mxu0 0.0
  %588 = vmatpush1.msra.mxu0 0.0
  %589 = vmatprep.subr.mxu0 0.0
  %590 = vmatpush1.msra.mxu0 0.0
  %591 = vmatprep.subr.mxu0 0.0
  %592 = vmatpush1.msra.mxu0 0.0
  %593 = vmatprep.subr.mxu0 0.0
  %594 = vmatpush1.msra.mxu0 0.0
  %595 = vmatprep.mubr.f32.mxu0 0.0
  %596 = vmatmul.mubr.f32.gmra.mrb[0].mxu0 %v529
  %v597 = vpop.f32.mrb[0].mxu0
  %v598 = vadd.f32 %v306, %v597
  %v599 = vpop.f32.mrb[0].mxu0
  %600 = vdwg.mxu0
  %v601 = vadd.f32 %v528, %v598
  %v602 = vxor.u32 %v601, 2147483648
  %v603 = vmul.f32 %v602, 1.442695
  %v604 = vpow.pop %v603
  %v605 = vadd.f32 %v604, 1.0
  %v606 = vrcp.pop %v605
  %v607 = vmul.f32 1.0, %v606
  %609 = vrot.lane.b32.xlu0 %v598, 64
  %v610 = vpop.permute.xlu0 %609
  %v612 = vmul.f32 %v607, %v610
  %614 = vrot.lane.b32.xlu0 %v612, 64
  %v615 = vpop.permute.xlu0 %614
  %v617 = vadd.f32 %v528, %v615
  %v618 = vtanh.pop %v617
  %v619 = vsub.f32 %v520, %v618
  %621 = vrot.lane.b32.xlu0 %v619, 96
  %v622 = vpop.permute.xlu0 %621
  %v624 = vmul.f32 %v607, %v622
  %626 = vrot.lane.b32.xlu0 %v624, 32
  %v627 = vpop.permute.xlu0 %626
  %v629 = vadd.f32 %v618, %v627
  %631 = vrot.lane.b32.xlu0 %v629, 64
  %v632 = vpop.permute.xlu0 %631
  %s634 = scalar_lea.vmem [#allocation3], 16
  %635 = vst.msk [vmem:[%s634] sm:$0xff] %vm159, %v632
  %s636 = scalar_lea.vmem [#allocation2], 24
  %v637 = vld [vmem:[%s636] sm:$0xff]
  %v638 = vsel %vm159, %v632, 0
  %640 = vmatprep.subr.mxu0 0.0
  %641 = vmatpush1.msra.mxu0 %v297
  %642 = vmatprep.subr.mxu0 0.0
  %643 = vmatpush1.msra.mxu0 %v298
  %644 = vmatprep.subr.mxu0 0.0
  %645 = vmatpush1.msra.mxu0 %v299
  %646 = vmatprep.subr.mxu0 0.0
  %647 = vmatpush1.msra.mxu0 %v300
  %648 = vmatprep.subr.mxu0 0.0
  %649 = vmatpush1.msra.mxu0 0.0
  %650 = vmatprep.subr.mxu0 0.0
  %651 = vmatpush1.msra.mxu0 0.0
  %652 = vmatprep.subr.mxu0 0.0
  %653 = vmatpush1.msra.mxu0 0.0
  %654 = vmatprep.subr.mxu0 0.0
  %655 = vmatpush1.msra.mxu0 0.0
  %656 = vmatprep.subr.mxu0 0.0
  %657 = vmatpush1.msra.mxu0 0.0
  %658 = vmatprep.subr.mxu0 0.0
  %659 = vmatpush1.msra.mxu0 0.0
  %660 = vmatprep.subr.mxu0 0.0
  %661 = vmatpush1.msra.mxu0 0.0
  %662 = vmatprep.subr.mxu0 0.0
  %663 = vmatpush1.msra.mxu0 0.0
  %664 = vmatprep.subr.mxu0 0.0
  %665 = vmatpush1.msra.mxu0 0.0
  %666 = vmatprep.subr.mxu0 0.0
  %667 = vmatpush1.msra.mxu0 0.0
  %668 = vmatprep.subr.mxu0 0.0
  %669 = vmatpush1.msra.mxu0 0.0
  %670 = vmatprep.subr.mxu0 0.0
  %671 = vmatpush1.msra.mxu0 0.0
  %672 = vmatprep.subr.mxu0 0.0
  %673 = vmatpush1.msra.mxu0 0.0
  %674 = vmatprep.subr.mxu0 0.0
  %675 = vmatpush1.msra.mxu0 0.0
  %676 = vmatprep.subr.mxu0 0.0
  %677 = vmatpush1.msra.mxu0 0.0
  %678 = vmatprep.subr.mxu0 0.0
  %679 = vmatpush1.msra.mxu0 0.0
  %680 = vmatprep.subr.mxu0 0.0
  %681 = vmatpush1.msra.mxu0 0.0
  %682 = vmatprep.subr.mxu0 0.0
  %683 = vmatpush1.msra.mxu0 0.0
  %684 = vmatprep.subr.mxu0 0.0
  %685 = vmatpush1.msra.mxu0 0.0
  %686 = vmatprep.subr.mxu0 0.0
  %687 = vmatpush1.msra.mxu0 0.0
  %688 = vmatprep.subr.mxu0 0.0
  %689 = vmatpush1.msra.mxu0 0.0
  %690 = vmatprep.subr.mxu0 0.0
  %691 = vmatpush1.msra.mxu0 0.0
  %692 = vmatprep.subr.mxu0 0.0
  %693 = vmatpush1.msra.mxu0 0.0
  %694 = vmatprep.subr.mxu0 0.0
  %695 = vmatpush1.msra.mxu0 0.0
  %696 = vmatprep.subr.mxu0 0.0
  %697 = vmatpush1.msra.mxu0 0.0
  %698 = vmatprep.subr.mxu0 0.0
  %699 = vmatpush1.msra.mxu0 0.0
  %700 = vmatprep.subr.mxu0 0.0
  %701 = vmatpush1.msra.mxu0 0.0
  %702 = vmatprep.subr.mxu0 0.0
  %703 = vmatpush1.msra.mxu0 0.0
  %704 = vmatprep.mubr.f32.mxu0 0.0
  %705 = vmatmul.mubr.f32.gmra.mrb[0].mxu0 %v638
  %v706 = vpop.f32.mrb[0].mxu0
  %v707 = vadd.f32 %v306, %v706
  %v708 = vpop.f32.mrb[0].mxu0
  %709 = vdwg.mxu0
  %v710 = vadd.f32 %v637, %v707
  %v711 = vxor.u32 %v710, 2147483648
  %v712 = vmul.f32 %v711, 1.442695
  %v713 = vpow.pop %v712
  %v714 = vadd.f32 %v713, 1.0
  %v715 = vrcp.pop %v714
  %v716 = vmul.f32 1.0, %v715
  %718 = vrot.lane.b32.xlu0 %v707, 64
  %v719 = vpop.permute.xlu0 %718
  %v721 = vmul.f32 %v716, %v719
  %723 = vrot.lane.b32.xlu0 %v721, 64
  %v724 = vpop.permute.xlu0 %723
  %v726 = vadd.f32 %v637, %v724
  %v727 = vtanh.pop %v726
  %v728 = vsub.f32 %v629, %v727
  %730 = vrot.lane.b32.xlu0 %v728, 96
  %v731 = vpop.permute.xlu0 %730
  %v733 = vmul.f32 %v716, %v731
  %735 = vrot.lane.b32.xlu0 %v733, 32
  %v736 = vpop.permute.xlu0 %735
  %v738 = vadd.f32 %v727, %v736
  %740 = vrot.lane.b32.xlu0 %v738, 64
  %v741 = vpop.permute.xlu0 %740
  %s743 = scalar_lea.vmem [#allocation3], 24
  %744 = vst.msk [vmem:[%s743] sm:$0xff] %vm159, %v741
  %s745 = scalar_lea.vmem [#allocation2], 32
  %v746 = vld [vmem:[%s745] sm:$0xff]
  %v747 = vsel %vm159, %v741, 0
  %749 = vmatprep.subr.mxu0 0.0
  %750 = vmatpush1.msra.mxu0 %v297
  %751 = vmatprep.subr.mxu0 0.0
  %752 = vmatpush1.msra.mxu0 %v298
  %753 = vmatprep.subr.mxu0 0.0
  %754 = vmatpush1.msra.mxu0 %v299
  %755 = vmatprep.subr.mxu0 0.0
  %756 = vmatpush1.msra.mxu0 %v300
  %757 = vmatprep.subr.mxu0 0.0
  %758 = vmatpush1.msra.mxu0 0.0
  %759 = vmatprep.subr.mxu0 0.0
  %760 = vmatpush1.msra.mxu0 0.0
  %761 = vmatprep.subr.mxu0 0.0
  %762 = vmatpush1.msra.mxu0 0.0
  %763 = vmatprep.subr.mxu0 0.0
  %764 = vmatpush1.msra.mxu0 0.0
  %765 = vmatprep.subr.mxu0 0.0
  %766 = vmatpush1.msra.mxu0 0.0
  %767 = vmatprep.subr.mxu0 0.0
  %768 = vmatpush1.msra.mxu0 0.0
  %769 = vmatprep.subr.mxu0 0.0
  %770 = vmatpush1.msra.mxu0 0.0
  %771 = vmatprep.subr.mxu0 0.0
  %772 = vmatpush1.msra.mxu0 0.0
  %773 = vmatprep.subr.mxu0 0.0
  %774 = vmatpush1.msra.mxu0 0.0
  %775 = vmatprep.subr.mxu0 0.0
  %776 = vmatpush1.msra.mxu0 0.0
  %777 = vmatprep.subr.mxu0 0.0
  %778 = vmatpush1.msra.mxu0 0.0
  %779 = vmatprep.subr.mxu0 0.0
  %780 = vmatpush1.msra.mxu0 0.0
  %781 = vmatprep.subr.mxu0 0.0
  %782 = vmatpush1.msra.mxu0 0.0
  %783 = vmatprep.subr.mxu0 0.0
  %784 = vmatpush1.msra.mxu0 0.0
  %785 = vmatprep.subr.mxu0 0.0
  %786 = vmatpush1.msra.mxu0 0.0
  %787 = vmatprep.subr.mxu0 0.0
  %788 = vmatpush1.msra.mxu0 0.0
  %789 = vmatprep.subr.mxu0 0.0
  %790 = vmatpush1.msra.mxu0 0.0
  %791 = vmatprep.subr.mxu0 0.0
  %792 = vmatpush1.msra.mxu0 0.0
  %793 = vmatprep.subr.mxu0 0.0
  %794 = vmatpush1.msra.mxu0 0.0
  %795 = vmatprep.subr.mxu0 0.0
  %796 = vmatpush1.msra.mxu0 0.0
  %797 = vmatprep.subr.mxu0 0.0
  %798 = vmatpush1.msra.mxu0 0.0
  %799 = vmatprep.subr.mxu0 0.0
  %800 = vmatpush1.msra.mxu0 0.0
  %801 = vmatprep.subr.mxu0 0.0
  %802 = vmatpush1.msra.mxu0 0.0
  %803 = vmatprep.subr.mxu0 0.0
  %804 = vmatpush1.msra.mxu0 0.0
  %805 = vmatprep.subr.mxu0 0.0
  %806 = vmatpush1.msra.mxu0 0.0
  %807 = vmatprep.subr.mxu0 0.0
  %808 = vmatpush1.msra.mxu0 0.0
  %809 = vmatprep.subr.mxu0 0.0
  %810 = vmatpush1.msra.mxu0 0.0
  %811 = vmatprep.subr.mxu0 0.0
  %812 = vmatpush1.msra.mxu0 0.0
  %813 = vmatprep.mubr.f32.mxu0 0.0
  %814 = vmatmul.mubr.f32.gmra.mrb[0].mxu0 %v747
  %v815 = vpop.f32.mrb[0].mxu0
  %v816 = vadd.f32 %v306, %v815
  %v817 = vpop.f32.mrb[0].mxu0
  %818 = vdwg.mxu0
  %v819 = vadd.f32 %v746, %v816
  %v820 = vxor.u32 %v819, 2147483648
  %v821 = vmul.f32 %v820, 1.442695
  %v822 = vpow.pop %v821
  %v823 = vadd.f32 %v822, 1.0
  %v824 = vrcp.pop %v823
  %v825 = vmul.f32 1.0, %v824
  %827 = vrot.lane.b32.xlu0 %v816, 64
  %v828 = vpop.permute.xlu0 %827
  %v830 = vmul.f32 %v825, %v828
  %832 = vrot.lane.b32.xlu0 %v830, 64
  %v833 = vpop.permute.xlu0 %832
  %v835 = vadd.f32 %v746, %v833
  %v836 = vtanh.pop %v835
  %v837 = vsub.f32 %v738, %v836
  %839 = vrot.lane.b32.xlu0 %v837, 96
  %v840 = vpop.permute.xlu0 %839
  %v842 = vmul.f32 %v825, %v840
  %844 = vrot.lane.b32.xlu0 %v842, 32
  %v845 = vpop.permute.xlu0 %844
  %v847 = vadd.f32 %v836, %v845
  %849 = vrot.lane.b32.xlu0 %v847, 64
  %v850 = vpop.permute.xlu0 %849
  %s852 = scalar_lea.vmem [#allocation3], 32
  %853 = vst.msk [vmem:[%s852] sm:$0xff] %vm159, %v850
  %s854 = scalar_lea.vmem [#allocation2], 40
  %v855 = vld [vmem:[%s854] sm:$0xff]
  %v856 = vsel %vm159, %v850, 0
  %858 = vmatprep.subr.mxu0 0.0
  %859 = vmatpush1.msra.mxu0 %v297
  %860 = vmatprep.subr.mxu0 0.0
  %861 = vmatpush1.msra.mxu0 %v298
  %862 = vmatprep.subr.mxu0 0.0
  %863 = vmatpush1.msra.mxu0 %v299
  %864 = vmatprep.subr.mxu0 0.0
  %865 = vmatpush1.msra.mxu0 %v300
  %866 = vmatprep.subr.mxu0 0.0
  %867 = vmatpush1.msra.mxu0 0.0
  %868 = vmatprep.subr.mxu0 0.0
  %869 = vmatpush1.msra.mxu0 0.0
  %870 = vmatprep.subr.mxu0 0.0
  %871 = vmatpush1.msra.mxu0 0.0
  %872 = vmatprep.subr.mxu0 0.0
  %873 = vmatpush1.msra.mxu0 0.0
  %874 = vmatprep.subr.mxu0 0.0
  %875 = vmatpush1.msra.mxu0 0.0
  %876 = vmatprep.subr.mxu0 0.0
  %877 = vmatpush1.msra.mxu0 0.0
  %878 = vmatprep.subr.mxu0 0.0
  %879 = vmatpush1.msra.mxu0 0.0
  %880 = vmatprep.subr.mxu0 0.0
  %881 = vmatpush1.msra.mxu0 0.0
  %882 = vmatprep.subr.mxu0 0.0
  %883 = vmatpush1.msra.mxu0 0.0
  %884 = vmatprep.subr.mxu0 0.0
  %885 = vmatpush1.msra.mxu0 0.0
  %886 = vmatprep.subr.mxu0 0.0
  %887 = vmatpush1.msra.mxu0 0.0
  %888 = vmatprep.subr.mxu0 0.0
  %889 = vmatpush1.msra.mxu0 0.0
  %890 = vmatprep.subr.mxu0 0.0
  %891 = vmatpush1.msra.mxu0 0.0
  %892 = vmatprep.subr.mxu0 0.0
  %893 = vmatpush1.msra.mxu0 0.0
  %894 = vmatprep.subr.mxu0 0.0
  %895 = vmatpush1.msra.mxu0 0.0
  %896 = vmatprep.subr.mxu0 0.0
  %897 = vmatpush1.msra.mxu0 0.0
  %898 = vmatprep.subr.mxu0 0.0
  %899 = vmatpush1.msra.mxu0 0.0
  %900 = vmatprep.subr.mxu0 0.0
  %901 = vmatpush1.msra.mxu0 0.0
  %902 = vmatprep.subr.mxu0 0.0
  %903 = vmatpush1.msra.mxu0 0.0
  %904 = vmatprep.subr.mxu0 0.0
  %905 = vmatpush1.msra.mxu0 0.0
  %906 = vmatprep.subr.mxu0 0.0
  %907 = vmatpush1.msra.mxu0 0.0
  %908 = vmatprep.subr.mxu0 0.0
  %909 = vmatpush1.msra.mxu0 0.0
  %910 = vmatprep.subr.mxu0 0.0
  %911 = vmatpush1.msra.mxu0 0.0
  %912 = vmatprep.subr.mxu0 0.0
  %913 = vmatpush1.msra.mxu0 0.0
  %914 = vmatprep.subr.mxu0 0.0
  %915 = vmatpush1.msra.mxu0 0.0
  %916 = vmatprep.subr.mxu0 0.0
  %917 = vmatpush1.msra.mxu0 0.0
  %918 = vmatprep.subr.mxu0 0.0
  %919 = vmatpush1.msra.mxu0 0.0
  %920 = vmatprep.subr.mxu0 0.0
  %921 = vmatpush1.msra.mxu0 0.0
  %922 = vmatprep.mubr.f32.mxu0 0.0
  %923 = vmatmul.mubr.f32.gmra.mrb[0].mxu0 %v856
  %v924 = vpop.f32.mrb[0].mxu0
  %v925 = vadd.f32 %v306, %v924
  %v926 = vpop.f32.mrb[0].mxu0
  %927 = vdwg.mxu0
  %v928 = vadd.f32 %v855, %v925
  %v929 = vxor.u32 %v928, 2147483648
  %v930 = vmul.f32 %v929, 1.442695
  %v931 = vpow.pop %v930
  %v932 = vadd.f32 %v931, 1.0
  %v933 = vrcp.pop %v932
  %v934 = vmul.f32 1.0, %v933
  %936 = vrot.lane.b32.xlu0 %v925, 64
  %v937 = vpop.permute.xlu0 %936
  %v939 = vmul.f32 %v934, %v937
  %941 = vrot.lane.b32.xlu0 %v939, 64
  %v942 = vpop.permute.xlu0 %941
  %v944 = vadd.f32 %v855, %v942
  %v945 = vtanh.pop %v944
  %v946 = vsub.f32 %v847, %v945
  %948 = vrot.lane.b32.xlu0 %v946, 96
  %v949 = vpop.permute.xlu0 %948
  %v951 = vmul.f32 %v934, %v949
  %953 = vrot.lane.b32.xlu0 %v951, 32
  %v954 = vpop.permute.xlu0 %953
  %v956 = vadd.f32 %v945, %v954
  %958 = vrot.lane.b32.xlu0 %v956, 64
  %v959 = vpop.permute.xlu0 %958
  %s961 = scalar_lea.vmem [#allocation3], 40
  %962 = vst.msk [vmem:[%s961] sm:$0xff] %vm159, %v959
  %s963 = scalar_lea.vmem [#allocation2], 48
  %v964 = vld [vmem:[%s963] sm:$0xff]
  %v965 = vsel %vm159, %v959, 0
  %967 = vmatprep.subr.mxu0 0.0
  %968 = vmatpush1.msra.mxu0 %v297
  %969 = vmatprep.subr.mxu0 0.0
  %970 = vmatpush1.msra.mxu0 %v298
  %971 = vmatprep.subr.mxu0 0.0
  %972 = vmatpush1.msra.mxu0 %v299
  %973 = vmatprep.subr.mxu0 0.0
  %974 = vmatpush1.msra.mxu0 %v300
  %975 = vmatprep.subr.mxu0 0.0
  %976 = vmatpush1.msra.mxu0 0.0
  %977 = vmatprep.subr.mxu0 0.0
  %978 = vmatpush1.msra.mxu0 0.0
  %979 = vmatprep.subr.mxu0 0.0
  %980 = vmatpush1.msra.mxu0 0.0
  %981 = vmatprep.subr.mxu0 0.0
  %982 = vmatpush1.msra.mxu0 0.0
  %983 = vmatprep.subr.mxu0 0.0
  %984 = vmatpush1.msra.mxu0 0.0
  %985 = vmatprep.subr.mxu0 0.0
  %986 = vmatpush1.msra.mxu0 0.0
  %987 = vmatprep.subr.mxu0 0.0
  %988 = vmatpush1.msra.mxu0 0.0
  %989 = vmatprep.subr.mxu0 0.0
  %990 = vmatpush1.msra.mxu0 0.0
  %991 = vmatprep.subr.mxu0 0.0
  %992 = vmatpush1.msra.mxu0 0.0
  %993 = vmatprep.subr.mxu0 0.0
  %994 = vmatpush1.msra.mxu0 0.0
  %995 = vmatprep.subr.mxu0 0.0
  %996 = vmatpush1.msra.mxu0 0.0
  %997 = vmatprep.subr.mxu0 0.0
  %998 = vmatpush1.msra.mxu0 0.0
  %999 = vmatprep.subr.mxu0 0.0
  %1000 = vmatpush1.msra.mxu0 0.0
  %1001 = vmatprep.subr.mxu0 0.0
  %1002 = vmatpush1.msra.mxu0 0.0
  %1003 = vmatprep.subr.mxu0 0.0
  %1004 = vmatpush1.msra.mxu0 0.0
  %1005 = vmatprep.subr.mxu0 0.0
  %1006 = vmatpush1.msra.mxu0 0.0
  %1007 = vmatprep.subr.mxu0 0.0
  %1008 = vmatpush1.msra.mxu0 0.0
  %1009 = vmatprep.subr.mxu0 0.0
  %1010 = vmatpush1.msra.mxu0 0.0
  %1011 = vmatprep.subr.mxu0 0.0
  %1012 = vmatpush1.msra.mxu0 0.0
  %1013 = vmatprep.subr.mxu0 0.0
  %1014 = vmatpush1.msra.mxu0 0.0
  %1015 = vmatprep.subr.mxu0 0.0
  %1016 = vmatpush1.msra.mxu0 0.0
  %1017 = vmatprep.subr.mxu0 0.0
  %1018 = vmatpush1.msra.mxu0 0.0
  %1019 = vmatprep.subr.mxu0 0.0
  %1020 = vmatpush1.msra.mxu0 0.0
  %1021 = vmatprep.subr.mxu0 0.0
  %1022 = vmatpush1.msra.mxu0 0.0
  %1023 = vmatprep.subr.mxu0 0.0
  %1024 = vmatpush1.msra.mxu0 0.0
  %1025 = vmatprep.subr.mxu0 0.0
  %1026 = vmatpush1.msra.mxu0 0.0
  %1027 = vmatprep.subr.mxu0 0.0
  %1028 = vmatpush1.msra.mxu0 0.0
  %1029 = vmatprep.subr.mxu0 0.0
  %1030 = vmatpush1.msra.mxu0 0.0
  %1031 = vmatprep.mubr.f32.mxu0 0.0
  %1032 = vmatmul.mubr.f32.gmra.mrb[0].mxu0 %v965
  %v1033 = vpop.f32.mrb[0].mxu0
  %v1034 = vadd.f32 %v306, %v1033
  %v1035 = vpop.f32.mrb[0].mxu0
  %1036 = vdwg.mxu0
  %v1037 = vadd.f32 %v964, %v1034
  %v1038 = vxor.u32 %v1037, 2147483648
  %v1039 = vmul.f32 %v1038, 1.442695
  %v1040 = vpow.pop %v1039
  %v1041 = vadd.f32 %v1040, 1.0
  %v1042 = vrcp.pop %v1041
  %v1043 = vmul.f32 1.0, %v1042
  %1045 = vrot.lane.b32.xlu0 %v1034, 64
  %v1046 = vpop.permute.xlu0 %1045
  %v1048 = vmul.f32 %v1043, %v1046
  %1050 = vrot.lane.b32.xlu0 %v1048, 64
  %v1051 = vpop.permute.xlu0 %1050
  %v1053 = vadd.f32 %v964, %v1051
  %v1054 = vtanh.pop %v1053
  %v1055 = vsub.f32 %v956, %v1054
  %1057 = vrot.lane.b32.xlu0 %v1055, 96
  %v1058 = vpop.permute.xlu0 %1057
  %v1060 = vmul.f32 %v1043, %v1058
  %1062 = vrot.lane.b32.xlu0 %v1060, 32
  %v1063 = vpop.permute.xlu0 %1062
  %v1065 = vadd.f32 %v1054, %v1063
  %1067 = vrot.lane.b32.xlu0 %v1065, 64
  %v1068 = vpop.permute.xlu0 %1067
  %s1070 = scalar_lea.vmem [#allocation3], 48
  %1071 = vst.msk [vmem:[%s1070] sm:$0xff] %vm159, %v1068
  %s1072 = scalar_lea.vmem [#allocation2], 56
  %v1073 = vld [vmem:[%s1072] sm:$0xff]
  %v1074 = vsel %vm159, %v1068, 0
  %1076 = vmatprep.subr.mxu0 0.0
  %1077 = vmatpush1.msra.mxu0 %v297
  %1078 = vmatprep.subr.mxu0 0.0
  %1079 = vmatpush1.msra.mxu0 %v298
  %1080 = vmatprep.subr.mxu0 0.0
  %1081 = vmatpush1.msra.mxu0 %v299
  %1082 = vmatprep.subr.mxu0 0.0
  %1083 = vmatpush1.msra.mxu0 %v300
  %1084 = vmatprep.subr.mxu0 0.0
  %1085 = vmatpush1.msra.mxu0 0.0
  %1086 = vmatprep.subr.mxu0 0.0
  %1087 = vmatpush1.msra.mxu0 0.0
  %1088 = vmatprep.subr.mxu0 0.0
  %1089 = vmatpush1.msra.mxu0 0.0
  %1090 = vmatprep.subr.mxu0 0.0
  %1091 = vmatpush1.msra.mxu0 0.0
  %1092 = vmatprep.subr.mxu0 0.0
  %1093 = vmatpush1.msra.mxu0 0.0
  %1094 = vmatprep.subr.mxu0 0.0
  %1095 = vmatpush1.msra.mxu0 0.0
  %1096 = vmatprep.subr.mxu0 0.0
  %1097 = vmatpush1.msra.mxu0 0.0
  %1098 = vmatprep.subr.mxu0 0.0
  %1099 = vmatpush1.msra.mxu0 0.0
  %1100 = vmatprep.subr.mxu0 0.0
  %1101 = vmatpush1.msra.mxu0 0.0
  %1102 = vmatprep.subr.mxu0 0.0
  %1103 = vmatpush1.msra.mxu0 0.0
  %1104 = vmatprep.subr.mxu0 0.0
  %1105 = vmatpush1.msra.mxu0 0.0
  %1106 = vmatprep.subr.mxu0 0.0
  %1107 = vmatpush1.msra.mxu0 0.0
  %1108 = vmatprep.subr.mxu0 0.0
  %1109 = vmatpush1.msra.mxu0 0.0
  %1110 = vmatprep.subr.mxu0 0.0
  %1111 = vmatpush1.msra.mxu0 0.0
  %1112 = vmatprep.subr.mxu0 0.0
  %1113 = vmatpush1.msra.mxu0 0.0
  %1114 = vmatprep.subr.mxu0 0.0
  %1115 = vmatpush1.msra.mxu0 0.0
  %1116 = vmatprep.subr.mxu0 0.0
  %1117 = vmatpush1.msra.mxu0 0.0
  %1118 = vmatprep.subr.mxu0 0.0
  %1119 = vmatpush1.msra.mxu0 0.0
  %1120 = vmatprep.subr.mxu0 0.0
  %1121 = vmatpush1.msra.mxu0 0.0
  %1122 = vmatprep.subr.mxu0 0.0
  %1123 = vmatpush1.msra.mxu0 0.0
  %1124 = vmatprep.subr.mxu0 0.0
  %1125 = vmatpush1.msra.mxu0 0.0
  %1126 = vmatprep.subr.mxu0 0.0
  %1127 = vmatpush1.msra.mxu0 0.0
  %1128 = vmatprep.subr.mxu0 0.0
  %1129 = vmatpush1.msra.mxu0 0.0
  %1130 = vmatprep.subr.mxu0 0.0
  %1131 = vmatpush1.msra.mxu0 0.0
  %1132 = vmatprep.subr.mxu0 0.0
  %1133 = vmatpush1.msra.mxu0 0.0
  %1134 = vmatprep.subr.mxu0 0.0
  %1135 = vmatpush1.msra.mxu0 0.0
  %1136 = vmatprep.subr.mxu0 0.0
  %1137 = vmatpush1.msra.mxu0 0.0
  %1138 = vmatprep.subr.mxu0 0.0
  %1139 = vmatpush1.msra.mxu0 0.0
  %1140 = vmatprep.mubr.f32.mxu0 0.0
  %1141 = vmatmul.mubr.f32.gmra.mrb[0].mxu0 %v1074
  %v1142 = vpop.f32.mrb[0].mxu0
  %v1143 = vadd.f32 %v306, %v1142
  %v1144 = vpop.f32.mrb[0].mxu0
  %1145 = vdwg.mxu0
  %v1146 = vadd.f32 %v1073, %v1143
  %v1147 = vxor.u32 %v1146, 2147483648
  %v1148 = vmul.f32 %v1147, 1.442695
  %v1149 = vpow.pop %v1148
  %v1150 = vadd.f32 %v1149, 1.0
  %v1151 = vrcp.pop %v1150
  %v1152 = vmul.f32 1.0, %v1151
  %1154 = vrot.lane.b32.xlu0 %v1143, 64
  %v1155 = vpop.permute.xlu0 %1154
  %v1157 = vmul.f32 %v1152, %v1155
  %1159 = vrot.lane.b32.xlu0 %v1157, 64
  %v1160 = vpop.permute.xlu0 %1159
  %v1162 = vadd.f32 %v1073, %v1160
  %v1163 = vtanh.pop %v1162
  %v1164 = vsub.f32 %v1065, %v1163
  %1166 = vrot.lane.b32.xlu0 %v1164, 96
  %v1167 = vpop.permute.xlu0 %1166
  %v1169 = vmul.f32 %v1152, %v1167
  %1171 = vrot.lane.b32.xlu0 %v1169, 32
  %v1172 = vpop.permute.xlu0 %1171
  %v1174 = vadd.f32 %v1163, %v1172
  %1176 = vrot.lane.b32.xlu0 %v1174, 64
  %v1177 = vpop.permute.xlu0 %1176
  %s1179 = scalar_lea.vmem [#allocation3], 56
  %1180 = vst.msk [vmem:[%s1179] sm:$0xff] %vm159, %v1177
  %v1181 = vld [vmem:[%s2 + $0x60] sm:$0xff]
  %v1182 = vld [vmem:[%s2 + $0x68] sm:$0xff]
  %v1183 = vld [vmem:[%s2 + $0x70] sm:$0xff]
  %v1184 = vld [vmem:[%s2 + $0x78] sm:$0xff]
  %v1185 = vld [vmem:[%s2 + $0x80] sm:$0x1]
  %v1186 = vld [vmem:[#allocation3] sm:$0xff]
  %v1187 = vld [vmem:[#allocation3 + $0x8] sm:$0xff]
  %v1188 = vld [vmem:[#allocation3 + $0x10] sm:$0xff]
  %v1189 = vld [vmem:[#allocation3 + $0x18] sm:$0xff]
  %v1190 = vld [vmem:[#allocation3 + $0x20] sm:$0xff]
  %v1191 = vld [vmem:[#allocation3 + $0x28] sm:$0xff]
  %v1192 = vld [vmem:[#allocation3 + $0x30] sm:$0xff]
  %v1193 = vld [vmem:[#allocation3 + $0x38] sm:$0xff]
  %v1194 = vlaneseq
  %v1195 = vshrl.u32 %v1194, 7
  %v1196 = vsub.s32 0, %v1195
  %v1197 = vrot.slane %v1185, %v1196
  %v1199 = vsel %vm159, %v1186, 0
  %v1202 = vsel %vm159, %v1187, 0
  %v1205 = vsel %vm159, %v1188, 0
  %v1208 = vsel %vm159, %v1189, 0
  %v1211 = vsel %vm159, %v1190, 0
  %v1214 = vsel %vm159, %v1191, 0
  %v1217 = vsel %vm159, %v1192, 0
  %v1220 = vsel %vm159, %v1193, 0
  %1222 = vmatprep.subr.mxu0 0.0
  %1223 = vmatpush1.msra.mxu0 %v1181
  %1224 = vmatprep.subr.mxu0 0.0
  %1225 = vmatpush1.msra.mxu0 %v1182
  %1226 = vmatprep.subr.mxu0 0.0
  %1227 = vmatpush1.msra.mxu0 %v1183
  %1228 = vmatprep.subr.mxu0 0.0
  %1229 = vmatpush1.msra.mxu0 %v1184
  %1230 = vmatprep.subr.mxu0 0.0
  %1231 = vmatpush1.msra.mxu0 0.0
  %1232 = vmatprep.subr.mxu0 0.0
  %1233 = vmatpush1.msra.mxu0 0.0
  %1234 = vmatprep.subr.mxu0 0.0
  %1235 = vmatpush1.msra.mxu0 0.0
  %1236 = vmatprep.subr.mxu0 0.0
  %1237 = vmatpush1.msra.mxu0 0.0
  %1238 = vmatprep.subr.mxu0 0.0
  %1239 = vmatpush1.msra.mxu0 0.0
  %1240 = vmatprep.subr.mxu0 0.0
  %1241 = vmatpush1.msra.mxu0 0.0
  %1242 = vmatprep.subr.mxu0 0.0
  %1243 = vmatpush1.msra.mxu0 0.0
  %1244 = vmatprep.subr.mxu0 0.0
  %1245 = vmatpush1.msra.mxu0 0.0
  %1246 = vmatprep.subr.mxu0 0.0
  %1247 = vmatpush1.msra.mxu0 0.0
  %1248 = vmatprep.subr.mxu0 0.0
  %1249 = vmatpush1.msra.mxu0 0.0
  %1250 = vmatprep.subr.mxu0 0.0
  %1251 = vmatpush1.msra.mxu0 0.0
  %1252 = vmatprep.subr.mxu0 0.0
  %1253 = vmatpush1.msra.mxu0 0.0
  %1254 = vmatprep.subr.mxu0 0.0
  %1255 = vmatpush1.msra.mxu0 0.0
  %1256 = vmatprep.subr.mxu0 0.0
  %1257 = vmatpush1.msra.mxu0 0.0
  %1258 = vmatprep.subr.mxu0 0.0
  %1259 = vmatpush1.msra.mxu0 0.0
  %1260 = vmatprep.subr.mxu0 0.0
  %1261 = vmatpush1.msra.mxu0 0.0
  %1262 = vmatprep.subr.mxu0 0.0
  %1263 = vmatpush1.msra.mxu0 0.0
  %1264 = vmatprep.subr.mxu0 0.0
  %1265 = vmatpush1.msra.mxu0 0.0
  %1266 = vmatprep.subr.mxu0 0.0
  %1267 = vmatpush1.msra.mxu0 0.0
  %1268 = vmatprep.subr.mxu0 0.0
  %1269 = vmatpush1.msra.mxu0 0.0
  %1270 = vmatprep.subr.mxu0 0.0
  %1271 = vmatpush1.msra.mxu0 0.0
  %1272 = vmatprep.subr.mxu0 0.0
  %1273 = vmatpush1.msra.mxu0 0.0
  %1274 = vmatprep.subr.mxu0 0.0
  %1275 = vmatpush1.msra.mxu0 0.0
  %1276 = vmatprep.subr.mxu0 0.0
  %1277 = vmatpush1.msra.mxu0 0.0
  %1278 = vmatprep.subr.mxu0 0.0
  %1279 = vmatpush1.msra.mxu0 0.0
  %1280 = vmatprep.subr.mxu0 0.0
  %1281 = vmatpush1.msra.mxu0 0.0
  %1282 = vmatprep.subr.mxu0 0.0
  %1283 = vmatpush1.msra.mxu0 0.0
  %1284 = vmatprep.subr.mxu0 0.0
  %1285 = vmatpush1.msra.mxu0 0.0
  %1286 = vmatprep.mubr.f32.mxu0 0.0
  %1287 = vmatmul.mubr.f32.gmra.mrb[0].mxu0 %v1199
  %v1288 = vpop.f32.mrb[0].mxu0
  %v1289 = vadd.f32 %v1197, %v1288
  %v1290 = vpop.f32.mrb[0].mxu0
  %1291 = vmatprep.mubr.f32.mxu0 0.0
  %1292 = vmatmul.mubr.f32.gmra.mrb[0].mxu0 %v1202
  %v1293 = vpop.f32.mrb[0].mxu0
  %v1294 = vadd.f32 %v1197, %v1293
  %v1295 = vpop.f32.mrb[0].mxu0
  %1296 = vmatprep.mubr.f32.mxu0 0.0
  %1297 = vmatmul.mubr.f32.gmra.mrb[0].mxu0 %v1205
  %v1298 = vpop.f32.mrb[0].mxu0
  %v1299 = vadd.f32 %v1197, %v1298
  %v1300 = vpop.f32.mrb[0].mxu0
  %1301 = vmatprep.mubr.f32.mxu0 0.0
  %1302 = vmatmul.mubr.f32.gmra.mrb[0].mxu0 %v1208
  %v1303 = vpop.f32.mrb[0].mxu0
  %v1304 = vadd.f32 %v1197, %v1303
  %v1305 = vpop.f32.mrb[0].mxu0
  %1306 = vmatprep.mubr.f32.mxu0 0.0
  %1307 = vmatmul.mubr.f32.gmra.mrb[0].mxu0 %v1211
  %v1308 = vpop.f32.mrb[0].mxu0
  %v1309 = vadd.f32 %v1197, %v1308
  %v1310 = vpop.f32.mrb[0].mxu0
  %1311 = vmatprep.mubr.f32.mxu0 0.0
  %1312 = vmatmul.mubr.f32.gmra.mrb[0].mxu0 %v1214
  %v1313 = vpop.f32.mrb[0].mxu0
  %v1314 = vadd.f32 %v1197, %v1313
  %v1315 = vpop.f32.mrb[0].mxu0
  %1316 = vmatprep.mubr.f32.mxu0 0.0
  %1317 = vmatmul.mubr.f32.gmra.mrb[0].mxu0 %v1217
  %v1318 = vpop.f32.mrb[0].mxu0
  %v1319 = vadd.f32 %v1197, %v1318
  %v1320 = vpop.f32.mrb[0].mxu0
  %1321 = vmatprep.mubr.f32.mxu0 0.0
  %1322 = vmatmul.mubr.f32.gmra.mrb[0].mxu0 %v1220
  %v1323 = vpop.f32.mrb[0].mxu0
  %v1324 = vadd.f32 %v1197, %v1323
  %v1325 = vpop.f32.mrb[0].mxu0
  %1326 = vdwg.mxu0
  %1327 = vst [vmem:[%s3] sm:$0xff] %v1289
  %1328 = vst [vmem:[%s3 + $0x8] sm:$0xff] %v1294
  %1329 = vst [vmem:[%s3 + $0x10] sm:$0xff] %v1299
  %1330 = vst [vmem:[%s3 + $0x18] sm:$0xff] %v1304
  %1331 = vst [vmem:[%s3 + $0x20] sm:$0xff] %v1309
  %1332 = vst [vmem:[%s3 + $0x28] sm:$0xff] %v1314
  %1333 = vst [vmem:[%s3 + $0x30] sm:$0xff] %v1319
  %1334 = vst [vmem:[%s3 + $0x38] sm:$0xff] %v1324
  // Predicated region
  $region14: #{decoder_forward.1} parent=0 // pred_check
    _
  $region15: #{decoder_forward.1} parent=0 // pred_check_branch
    %1336 = sbr.rel (0) target = $region17
  $region16: #{decoder_forward.1} parent=0 // pred_region
    _
  $region17: #{decoder_forward.1} parent=0 // pred_fallthru
    _
  // Predicated region
  $region18: #{decoder_forward.1} parent=0 // pred_check
    _
  $region19: #{decoder_forward.1} parent=0 // pred_check_branch
    %1338 = sbr.rel (0) target = $region21
  $region20: #{decoder_forward.1} parent=0 // pred_region
    _
  $region21: #{decoder_forward.1} parent=0 // pred_fallthru
    _

</llo_original>
